<compile_context>
chip_gen: v7x
topology: tpu7x:2x2x1
jax: 0.10.0
libtpu: 0.0.40
codegen_flags: <defaults>
</compile_context>

<pallas_src>
import math
from functools import partial

import jax
import jax.numpy as jnp
from jax.experimental import pallas as pl
from jax.experimental.pallas import tpu as pltpu

_LANE = 128
_VMEM_LIMIT = 48 * 1024 * 1024          # explicit scoped-VMEM limit (under v7x's 64 MiB physical)
_VMEM_BUDGET = 30 * 1024 * 1024         # working-set budget used by the tile chooser


# ----------------------------------------------------------------------------
# Small helpers
# ----------------------------------------------------------------------------
def _cdiv(a, b):
    return -(-a // b)


def _round_up(n, m):
    return _cdiv(n, m) * m


def _pad_axis(a, axis, m):
    pad = (-a.shape[axis]) % m
    if pad == 0:
        return a
    cfg = [(0, 0)] * a.ndim
    cfg[axis] = (0, pad)
    return jnp.pad(a, cfg)


def _choose_tiling(batch, e_pad, cbytes, vmem_budget=_VMEM_BUDGET):
    """Pick a row tile (multiple of 8) so the reduce kernel's working set fits VMEM."""
    for target in (512, 256, 128, 64, 32, 16, 8):
        n_tiles = _cdiv(batch, target)
        tile = _round_up(_cdiv(batch, n_tiles), 8)
        b_pad = tile * n_tiles
        resident = 2 * 2 * b_pad * e_pad * cbytes   # out1/out2 column operands (double buffered)
        temps = 6 * tile * b_pad * 4                # f32 sim / exp(sim) intermediates
        if resident + temps <= vmem_budget or target == 8:
            return tile, b_pad


# ----------------------------------------------------------------------------
# Kernel 1: batch-tiled MLP embeddings g(x), h(y)  (weights resident in VMEM)
# ----------------------------------------------------------------------------
def make_embed_kernel(n_linear, tile, batch, n_pad):
    def kernel(*refs):
        x_ref, y_ref = refs[0], refs[1]
        g_refs = refs[2:2 + 2 * n_linear]
        h_refs = refs[2 + 2 * n_linear:2 + 4 * n_linear]
        out1_ref, out2_ref = refs[-2], refs[-1]

        def run_mlp(v, wrefs):
            for l in range(n_linear):
                w = wrefs[2 * l][...]                     # [K, N] compute dtype
                b = wrefs[2 * l + 1][...]                 # [1, N] f32
                acc = jnp.dot(v, w, preferred_element_type=jnp.float32) + b
                if l < n_linear - 1:                      # ReLU on all but the final linear
                    acc = jnp.maximum(acc, 0.0)
                v = acc.astype(w.dtype)                   # back to compute dtype for next MXU op
            return v

        o1 = run_mlp(x_ref[...], g_refs)
        o2 = run_mlp(y_ref[...], h_refs)

        if n_pad:  # zero the padded batch rows so they contribute exp(0)=1 downstream
            row = jax.lax.broadcasted_iota(jnp.int32, (tile, 1), 0) + pl.program_id(0) * tile
            keep = row < batch
            o1 = jnp.where(keep, o1, jnp.zeros((), o1.dtype))
            o2 = jnp.where(keep, o2, jnp.zeros((), o2.dtype))

        out1_ref[...] = o1
        out2_ref[...] = o2

    return kernel


def _embed_call(xp, yp, g_params, h_params, tile, batch, n_pad):
    b_pad, d_pad = xp.shape
    e_pad = g_params[-1][0].shape[1]
    n_linear = len(g_params)
    cdtype = xp.dtype

    flat_w, w_specs = [], []
    for W, b in list(g_params) + list(h_params):
        flat_w += [W, b]
        w_specs += [pl.BlockSpec(W.shape, lambda i: (0, 0)),   # resident weights
                    pl.BlockSpec(b.shape, lambda i: (0, 0))]

    row_in = pl.BlockSpec((tile, d_pad), lambda i: (i, 0))
    row_out = pl.BlockSpec((tile, e_pad), lambda i: (i, 0))

    return pl.pallas_call(
        make_embed_kernel(n_linear, tile, batch, n_pad),
        out_shape=(jax.ShapeDtypeStruct((b_pad, e_pad), cdtype),
                   jax.ShapeDtypeStruct((b_pad, e_pad), cdtype)),
        grid=(b_pad // tile,),
        in_specs=[row_in, row_in] + w_specs,
        out_specs=(row_out, row_out),
        compiler_params=pltpu.CompilerParams(
            dimension_semantics=("parallel",),
            vmem_limit_bytes=_VMEM_LIMIT),
    )(xp, yp, *flat_w)


# ----------------------------------------------------------------------------
# Kernel 2: row-tiled similarities + debiased-NCE partial sums
#   - out1/out2 resident; row tiles sliced from them (no duplicate HBM stream)
#   - neg_sum = row_total - exp(self) - pos - 2*n_pad  (no mask tensor)
#   - per-tile partial sums to lane-dense (8,128) blocks; "parallel" grid
# ----------------------------------------------------------------------------
def make_reduce_kernel(batch, tile, n_pad, tau_plus, temperature):
    n_neg = 2 * batch - 2
    inv_temp = 1.0 / temperature
    min_ng = float(n_neg) * math.exp(-1.0 / temperature)
    tau_n = tau_plus * float(n_neg)
    inv_1m_tau = 1.0 / (1.0 - tau_plus)
    pad_corr = 2.0 * float(n_pad)          # each zero pad column contributes exp(0)=1
    scale_rows = temperature != 1.0

    def kernel(o1_ref, o2_ref, part_ref):
        i = pl.program_id(0)
        start = pl.multiple_of(i * tile, tile)

        r1 = o1_ref[pl.ds(start, tile), :]          # [tile, Ep]  (slice of resident block)
        r2 = o2_ref[pl.ds(start, tile), :]
        a1 = o1_ref[...]                            # [Bpad, Ep]  resident column operands
        a2 = o2_ref[...]

        r1f = r1.astype(jnp.float32)
        r2f = r2.astype(jnp.float32)
        pos_logit = jnp.sum(r1f * r2f, axis=1, keepdims=True) * inv_temp     # [tile, 1]
        pos = jnp.exp(pos_logit)
        self1 = jnp.exp(jnp.sum(r1f * r1f, axis=1, keepdims=True) * inv_temp)
        self2 = jnp.exp(jnp.sum(r2f * r2f, axis=1, keepdims=True) * inv_temp)

        def row_total(rows):
            if scale_rows:
                rows = (rows.astype(jnp.float32) * inv_temp).astype(rows.dtype)
            s1 = jax.lax.dot_general(rows, a1, (((1,), (1,)), ((), ())),
                                     preferred_element_type=jnp.float32)     # [tile, Bpad]
            s2 = jax.lax.dot_general(rows, a2, (((1,), (1,)), ((), ())),
                                     preferred_element_type=jnp.float32)
            return (jnp.sum(jnp.exp(s1), axis=1, keepdims=True)
                    + jnp.sum(jnp.exp(s2), axis=1, keepdims=True))

        def terms(total, exp_self):
            neg_sum = total - exp_self - pos - pad_corr
            ng = (neg_sum - tau_n * pos) * inv_1m_tau
            ng = jnp.maximum(ng, min_ng)
            # log(pos / (pos + Ng)) == pos_logit - log(pos + Ng): no vector divide
            return pos_logit - jnp.log(pos + ng)

        tile_terms = terms(row_total(r1), self1) + terms(row_total(r2), self2)   # [tile, 1]
        if n_pad:  # padded rows must not contribute to the mean
            row = jax.lax.broadcasted_iota(jnp.int32, (tile, 1), 0) + start
            tile_terms = jnp.where(row < batch, tile_terms, 0.0)

        part_ref[...] = jnp.zeros((8, 128), jnp.float32) + jnp.sum(tile_terms)

    return kernel


def _reduce_call(out1, out2, batch, tile, n_pad, tau_plus, temperature):
    b_pad, e_pad = out1.shape
    n_tiles = b_pad // tile
    res_spec = pl.BlockSpec((b_pad, e_pad), lambda i: (0, 0))     # resident column operands

    return pl.pallas_call(
        make_reduce_kernel(batch, tile, n_pad, tau_plus, temperature),
        out_shape=jax.ShapeDtypeStruct((n_tiles * 8, 128), jnp.float32),
        grid=(n_tiles,),
        in_specs=[res_spec, res_spec],
        out_specs=pl.BlockSpec((8, 128), lambda i: (i, 0)),
        compiler_params=pltpu.CompilerParams(
            dimension_semantics=("parallel",),
            vmem_limit_bytes=_VMEM_LIMIT),
    )(out1, out2)


# ----------------------------------------------------------------------------
# Full forward
# ----------------------------------------------------------------------------
@partial(jax.jit, static_argnames=("tau_plus", "temperature", "compute_dtype"))
def dnce_forward(x, y, g_params, h_params, tau_plus=0.1, temperature=1.0,
                 compute_dtype=jnp.bfloat16):
    batch = x.shape[0]
    cdtype = jnp.dtype(compute_dtype)

    # Zero-pad feature dims to multiples of 128 (lane-dense, 128-aligned MXU K/N;
    # zero columns leave every dot product unchanged) and cast MXU operands.
    xp = _pad_axis(x, 1, _LANE)
    yp = _pad_axis(y, 1, _LANE)
    gp = [(_pad_axis(_pad_axis(W, 0, _LANE), 1, _LANE).astype(cdtype),
           _pad_axis(b, 1, _LANE).astype(jnp.float32)) for W, b in g_params]
    hp = [(_pad_axis(_pad_axis(W, 0, _LANE), 1, _LANE).astype(cdtype),
           _pad_axis(b, 1, _LANE).astype(jnp.float32)) for W, b in h_params]
    e_pad = gp[-1][0].shape[1]

    # Pick a row tile that fits the VMEM budget; zero-pad the batch to a multiple of it.
    tile, b_pad = _choose_tiling(batch, e_pad, cdtype.itemsize)
    n_pad = b_pad - batch
    if n_pad:
        xp = jnp.pad(xp, ((0, n_pad), (0, 0)))
        yp = jnp.pad(yp, ((0, n_pad), (0, 0)))
    xp = xp.astype(cdtype)
    yp = yp.astype(cdtype)

    out1, out2 = _embed_call(xp, yp, gp, hp, tile, batch, n_pad)
    parts = _reduce_call(out1, out2, batch, tile, n_pad, tau_plus, temperature)

    term_sum = jnp.sum(parts.reshape(-1, 8, 128)[:, 0, 0])
    return term_sum / (2.0 * batch) + math.log(float(batch))


# ----------------------------------------------------------------------------
# Parameter construction (mimics nn.Linear's U(-1/sqrt(fan_in), 1/sqrt(fan_in)))
# Weights stored as [in_features, out_features], biases as [1, out_features].
# ----------------------------------------------------------------------------
def make_mlp_params(key, dim, hidden_dim, output_dim, layers):
    sizes = [(dim, hidden_dim)] + [(hidden_dim, hidden_dim)] * layers + [(hidden_dim, output_dim)]
    keys = jax.random.split(key, len(sizes))
    params = []
    for k, (fin, fout) in zip(keys, sizes):
        kw, kb = jax.random.split(k)
        bound = 1.0 / math.sqrt(fin)
        W = jax.random.uniform(kw, (fin, fout), jnp.float32, -bound, bound)
        b = jax.random.uniform(kb, (1, fout), jnp.float32, -bound, bound)
        params.append((W, b))
    return params


# ----------------------------------------------------------------------------
# Pure-JAX reference of the PyTorch forward, for verification
# ----------------------------------------------------------------------------
def dnce_reference(x, y, g_params, h_params, tau_plus=0.1, temperature=1.0):
    hi = jax.lax.Precision.HIGHEST

    def mlp_apply(v, params):
        for (W, b) in params[:-1]:
            v = jnp.maximum(jnp.dot(v, W, precision=hi) + b, 0.0)
        W, b = params[-1]
        return jnp.dot(v, W, precision=hi) + b

    out1 = mlp_apply(x, g_params)
    out2 = mlp_apply(y, h_params)
    B = x.shape[0]
    out = jnp.concatenate([out1, out2], axis=0)
    neg = jnp.exp(jnp.dot(out, out.T, precision=hi) / temperature)
    rows = jnp.arange(2 * B) % B
    cols = jnp.arange(2 * B) % B
    mask = cols[None, :] != rows[:, None]
    neg_sum = jnp.sum(jnp.where(mask, neg, 0.0), axis=1)
    pos = jnp.exp(jnp.sum(out1 * out2, axis=-1) / temperature)
    pos = jnp.concatenate([pos, pos], axis=0)
    N = 2 * B - 2
    Ng = (-tau_plus * N * pos + neg_sum) / (1.0 - tau_plus)
    Ng = jnp.maximum(Ng, N * math.exp(-1.0 / temperature))
    mi = jnp.mean(jnp.log(pos / (pos + Ng))) + math.log(float(B))
    return mi


if __name__ == "__main__":
    DIM = 32          # input dim of x and y
    HIDDEN = 64       # hidden_dim
    EMBED = 32        # embed_dim
    LAYERS = 1        # extra hidden layers -> MLP = Linear,ReLU,Linear,ReLU,Linear
    B = 16            # batch size

    key = jax.random.PRNGKey(0)
    kx, ky, kg, kh = jax.random.split(key, 4)
    x = jax.random.normal(kx, (B, DIM), jnp.float32)
    y = jax.random.normal(ky, (B, DIM), jnp.float32)
    g_params = make_mlp_params(kg, DIM, HIDDEN, EMBED, LAYERS)
    h_params = make_mlp_params(kh, DIM, HIDDEN, EMBED, LAYERS)

    # f32 compute path: tight tolerance against the HIGHEST-precision reference.
    mi_f32 = jax.block_until_ready(
        dnce_forward(x, y, g_params, h_params, compute_dtype=jnp.float32))
    ref = dnce_reference(x, y, g_params, h_params)
    assert jnp.allclose(mi_f32, ref, rtol=2e-3, atol=2e-3), (float(mi_f32), float(ref))

    # bf16 MXU path (default): looser tolerance (bf16 operand rounding).
    mi_bf16 = jax.block_until_ready(
        dnce_forward(x, y, g_params, h_params, compute_dtype=jnp.bfloat16))
    assert jnp.allclose(mi_bf16, ref, rtol=2.5e-2, atol=2.5e-2), (float(mi_bf16), float(ref))

    # Non-divisible batch exercises the pad + analytic-correction path (no fallback tiles).
    x13, y13 = x[:13], y[:13]
    mi_13 = jax.block_until_ready(
        dnce_forward(x13, y13, g_params, h_params, compute_dtype=jnp.float32))
    ref_13 = dnce_reference(x13, y13, g_params, h_params)
    assert jnp.allclose(mi_13, ref_13, rtol=2e-3, atol=2e-3), (float(mi_13), float(ref_13))

    print("KERNEL_OK")
</pallas_src>

<mosaic_0001>
module attributes {stable_mosaic.version = 11 : i64} {
  func.func @kernel(%arg0: i32, %arg1: memref<16x128xf32, #tpu.memory_space<vmem>>, %arg2: memref<16x128xf32, #tpu.memory_space<vmem>>, %arg3: memref<8x128xf32, #tpu.memory_space<vmem>>) attributes {dimension_semantics = [#tpu.dimension_semantics<parallel>], iteration_bounds = array<i64: 1>, scalar_prefetch = 0 : i64, scratch_operands = 0 : i64, tpu.core_type = #tpu.core_type<tc>, window_params = [{pipeline_mode = #tpu.pipeline_mode<synchronous>, transform_indices = @transform_0, window_bounds = array<i64: 16, 128>}, {pipeline_mode = #tpu.pipeline_mode<synchronous>, transform_indices = @transform_1, window_bounds = array<i64: 16, 128>}, {transform_indices = @transform_2, window_bounds = array<i64: 8, 128>}]} {
    %c16_i32 = arith.constant 16 : i32
    %0 = arith.muli %arg0, %c16_i32 : i32
    %1 = tpu.assume_multiple %0, 16 : i32
    %2 = arith.index_cast %1 : i32 to index
    %c0 = arith.constant 0 : index
    %3 = vector.load %arg1[%2, %c0] : memref<16x128xf32, #tpu.memory_space<vmem>>, vector<16x128xf32>
    %4 = arith.index_cast %1 : i32 to index
    %c0_0 = arith.constant 0 : index
    %5 = vector.load %arg2[%4, %c0_0] : memref<16x128xf32, #tpu.memory_space<vmem>>, vector<16x128xf32>
    %c0_1 = arith.constant 0 : index
    %c0_2 = arith.constant 0 : index
    %6 = vector.load %arg1[%c0_1, %c0_2] : memref<16x128xf32, #tpu.memory_space<vmem>>, vector<16x128xf32>
    %c0_3 = arith.constant 0 : index
    %c0_4 = arith.constant 0 : index
    %7 = vector.load %arg2[%c0_3, %c0_4] : memref<16x128xf32, #tpu.memory_space<vmem>>, vector<16x128xf32>
    %8 = arith.mulf %3, %5 : vector<16x128xf32>
    %cst = arith.constant dense<0.000000e+00> : vector<16xf32>
    %9 = vector.multi_reduction <add>, %8, %cst [1] : vector<16x128xf32> to vector<16xf32>
    %10 = vector.shape_cast %9 : vector<16xf32> to vector<16x1xf32>
    %cst_5 = arith.constant 1.000000e+00 : f32
    %11 = vector.broadcast %cst_5 : f32 to vector<16x1xf32>
    %12 = arith.mulf %10, %11 : vector<16x1xf32>
    %13 = math.exp %12 : vector<16x1xf32>
    %14 = arith.mulf %3, %3 : vector<16x128xf32>
    %cst_6 = arith.constant dense<0.000000e+00> : vector<16xf32>
    %15 = vector.multi_reduction <add>, %14, %cst_6 [1] : vector<16x128xf32> to vector<16xf32>
    %16 = vector.shape_cast %15 : vector<16xf32> to vector<16x1xf32>
    %cst_7 = arith.constant 1.000000e+00 : f32
    %17 = vector.broadcast %cst_7 : f32 to vector<16x1xf32>
    %18 = arith.mulf %16, %17 : vector<16x1xf32>
    %19 = math.exp %18 : vector<16x1xf32>
    %20 = arith.mulf %5, %5 : vector<16x128xf32>
    %cst_8 = arith.constant dense<0.000000e+00> : vector<16xf32>
    %21 = vector.multi_reduction <add>, %20, %cst_8 [1] : vector<16x128xf32> to vector<16xf32>
    %22 = vector.shape_cast %21 : vector<16xf32> to vector<16x1xf32>
    %cst_9 = arith.constant 1.000000e+00 : f32
    %23 = vector.broadcast %cst_9 : f32 to vector<16x1xf32>
    %24 = arith.mulf %22, %23 : vector<16x1xf32>
    %25 = math.exp %24 : vector<16x1xf32>
    %cst_10 = arith.constant dense<0.000000e+00> : vector<16x16xf32>
    %26 = tpu.matmul %3, %6, %cst_10 {dimension_numbers = #tpu.dot_dimension_numbers<[1], [1], [0], [0], [0, 0, 1, 0], [], []>} : vector<16x128xf32>, vector<16x128xf32>, vector<16x16xf32> -> vector<16x16xf32>
    %cst_11 = arith.constant dense<0.000000e+00> : vector<16x16xf32>
    %27 = tpu.matmul %3, %7, %cst_11 {dimension_numbers = #tpu.dot_dimension_numbers<[1], [1], [0], [0], [0, 0, 1, 0], [], []>} : vector<16x128xf32>, vector<16x128xf32>, vector<16x16xf32> -> vector<16x16xf32>
    %28 = math.exp %26 : vector<16x16xf32>
    %cst_12 = arith.constant dense<0.000000e+00> : vector<16xf32>
    %29 = vector.multi_reduction <add>, %28, %cst_12 [1] : vector<16x16xf32> to vector<16xf32>
    %30 = vector.shape_cast %29 : vector<16xf32> to vector<16x1xf32>
    %31 = math.exp %27 : vector<16x16xf32>
    %cst_13 = arith.constant dense<0.000000e+00> : vector<16xf32>
    %32 = vector.multi_reduction <add>, %31, %cst_13 [1] : vector<16x16xf32> to vector<16xf32>
    %33 = vector.shape_cast %32 : vector<16xf32> to vector<16x1xf32>
    %34 = arith.addf %30, %33 : vector<16x1xf32>
    %35 = arith.subf %34, %19 : vector<16x1xf32>
    %36 = arith.subf %35, %13 : vector<16x1xf32>
    %cst_14 = arith.constant 0.000000e+00 : f32
    %37 = vector.broadcast %cst_14 : f32 to vector<16x1xf32>
    %38 = arith.subf %36, %37 : vector<16x1xf32>
    %cst_15 = arith.constant 3.000000e+00 : f32
    %39 = vector.broadcast %cst_15 : f32 to vector<16x1xf32>
    %40 = arith.mulf %39, %13 : vector<16x1xf32>
    %41 = arith.subf %38, %40 : vector<16x1xf32>
    %cst_16 = arith.constant 1.11111116 : f32
    %42 = vector.broadcast %cst_16 : f32 to vector<16x1xf32>
    %43 = arith.mulf %41, %42 : vector<16x1xf32>
    %cst_17 = arith.constant 11.0363836 : f32
    %44 = vector.broadcast %cst_17 : f32 to vector<16x1xf32>
    %45 = arith.maximumf %43, %44 : vector<16x1xf32>
    %46 = arith.addf %13, %45 : vector<16x1xf32>
    %47 = math.log %46 : vector<16x1xf32>
    %48 = arith.subf %12, %47 : vector<16x1xf32>
    %cst_18 = arith.constant dense<0.000000e+00> : vector<16x16xf32>
    %49 = tpu.matmul %5, %6, %cst_18 {dimension_numbers = #tpu.dot_dimension_numbers<[1], [1], [0], [0], [0, 0, 1, 0], [], []>} : vector<16x128xf32>, vector<16x128xf32>, vector<16x16xf32> -> vector<16x16xf32>
    %cst_19 = arith.constant dense<0.000000e+00> : vector<16x16xf32>
    %50 = tpu.matmul %5, %7, %cst_19 {dimension_numbers = #tpu.dot_dimension_numbers<[1], [1], [0], [0], [0, 0, 1, 0], [], []>} : vector<16x128xf32>, vector<16x128xf32>, vector<16x16xf32> -> vector<16x16xf32>
    %51 = math.exp %49 : vector<16x16xf32>
    %cst_20 = arith.constant dense<0.000000e+00> : vector<16xf32>
    %52 = vector.multi_reduction <add>, %51, %cst_20 [1] : vector<16x16xf32> to vector<16xf32>
    %53 = vector.shape_cast %52 : vector<16xf32> to vector<16x1xf32>
    %54 = math.exp %50 : vector<16x16xf32>
    %cst_21 = arith.constant dense<0.000000e+00> : vector<16xf32>
    %55 = vector.multi_reduction <add>, %54, %cst_21 [1] : vector<16x16xf32> to vector<16xf32>
    %56 = vector.shape_cast %55 : vector<16xf32> to vector<16x1xf32>
    %57 = arith.addf %53, %56 : vector<16x1xf32>
    %58 = arith.subf %57, %25 : vector<16x1xf32>
    %59 = arith.subf %58, %13 : vector<16x1xf32>
    %cst_22 = arith.constant 0.000000e+00 : f32
    %60 = vector.broadcast %cst_22 : f32 to vector<16x1xf32>
    %61 = arith.subf %59, %60 : vector<16x1xf32>
    %cst_23 = arith.constant 3.000000e+00 : f32
    %62 = vector.broadcast %cst_23 : f32 to vector<16x1xf32>
    %63 = arith.mulf %62, %13 : vector<16x1xf32>
    %64 = arith.subf %61, %63 : vector<16x1xf32>
    %cst_24 = arith.constant 1.11111116 : f32
    %65 = vector.broadcast %cst_24 : f32 to vector<16x1xf32>
    %66 = arith.mulf %64, %65 : vector<16x1xf32>
    %cst_25 = arith.constant 11.0363836 : f32
    %67 = vector.broadcast %cst_25 : f32 to vector<16x1xf32>
    %68 = arith.maximumf %66, %67 : vector<16x1xf32>
    %69 = arith.addf %13, %68 : vector<16x1xf32>
    %70 = math.log %69 : vector<16x1xf32>
    %71 = arith.subf %12, %70 : vector<16x1xf32>
    %72 = arith.addf %48, %71 : vector<16x1xf32>
    %cst_26 = arith.constant 0.000000e+00 : f32
    %73 = vector.broadcast %cst_26 : f32 to vector<8x128xf32>
    %74 = vector.shape_cast %72 : vector<16x1xf32> to vector<1x16x1xf32>
    %cst_27 = arith.constant dense<0.000000e+00> : vector<1xf32>
    %75 = vector.multi_reduction <add>, %74, %cst_27 [1, 2] : vector<1x16x1xf32> to vector<1xf32>
    %76 = vector.shape_cast %75 : vector<1xf32> to vector<1x1x1xf32>
    %77 = vector.extract %76[0, 0, 0] : f32 from vector<1x1x1xf32>
    %78 = vector.broadcast %77 : f32 to vector<8x128xf32>
    %79 = arith.addf %73, %78 : vector<8x128xf32>
    %c0_28 = arith.constant 0 : index
    %c0_29 = arith.constant 0 : index
    %80 = vector.load %arg3[%c0_28, %c0_29] : memref<8x128xf32, #tpu.memory_space<vmem>>, vector<8x128xf32>
    tpu.vector_store %arg3[%c0_28, %c0_29], %79 {strides = array<i32>} : memref<8x128xf32, #tpu.memory_space<vmem>>, vector<8x128xf32>,
    return
  }
  func.func @transform_0(%arg0: i32) -> (i32, i32) {
    %c0_i32 = arith.constant 0 : i32
    %c0_i32_0 = arith.constant 0 : i32
    %c0_i32_1 = arith.constant 0 : i32
    return %c0_i32, %c0_i32_0 : i32, i32
  }
  func.func @transform_1(%arg0: i32) -> (i32, i32) {
    %c0_i32 = arith.constant 0 : i32
    %c0_i32_0 = arith.constant 0 : i32
    %c0_i32_1 = arith.constant 0 : i32
    return %c0_i32, %c0_i32_0 : i32, i32
  }
  func.func @transform_2(%arg0: i32) -> (i32, i32) {
    %c0_i32 = arith.constant 0 : i32
    %c0_i32_0 = arith.constant 0 : i32
    return %arg0, %c0_i32 : i32, i32
  }
}

module attributes {stable_mosaic.version = 11 : i64} {
  func.func @kernel(%arg0: i32, %arg1: memref<16x128xf32, #tpu.memory_space<vmem>>, %arg2: memref<16x128xf32, #tpu.memory_space<vmem>>, %arg3: memref<128x128xf32, #tpu.memory_space<vmem>>, %arg4: memref<1x128xf32, #tpu.memory_space<vmem>>, %arg5: memref<128x128xf32, #tpu.memory_space<vmem>>, %arg6: memref<1x128xf32, #tpu.memory_space<vmem>>, %arg7: memref<128x128xf32, #tpu.memory_space<vmem>>, %arg8: memref<1x128xf32, #tpu.memory_space<vmem>>, %arg9: memref<128x128xf32, #tpu.memory_space<vmem>>, %arg10: memref<1x128xf32, #tpu.memory_space<vmem>>, %arg11: memref<128x128xf32, #tpu.memory_space<vmem>>, %arg12: memref<1x128xf32, #tpu.memory_space<vmem>>, %arg13: memref<128x128xf32, #tpu.memory_space<vmem>>, %arg14: memref<1x128xf32, #tpu.memory_space<vmem>>, %arg15: memref<16x128xf32, #tpu.memory_space<vmem>>, %arg16: memref<16x128xf32, #tpu.memory_space<vmem>>) attributes {dimension_semantics = [#tpu.dimension_semantics<parallel>], iteration_bounds = array<i64: 1>, scalar_prefetch = 0 : i64, scratch_operands = 0 : i64, tpu.core_type = #tpu.core_type<tc>, window_params = [{transform_indices = @transform_0, window_bounds = array<i64: 16, 128>}, {transform_indices = @transform_1, window_bounds = array<i64: 16, 128>}, {pipeline_mode = #tpu.pipeline_mode<synchronous>, transform_indices = @transform_2, window_bounds = array<i64: 128, 128>}, {pipeline_mode = #tpu.pipeline_mode<synchronous>, transform_indices = @transform_3, window_bounds = array<i64: 1, 128>}, {pipeline_mode = #tpu.pipeline_mode<synchronous>, transform_indices = @transform_4, window_bounds = array<i64: 128, 128>}, {pipeline_mode = #tpu.pipeline_mode<synchronous>, transform_indices = @transform_5, window_bounds = array<i64: 1, 128>}, {pipeline_mode = #tpu.pipeline_mode<synchronous>, transform_indices = @transform_6, window_bounds = array<i64: 128, 128>}, {pipeline_mode = #tpu.pipeline_mode<synchronous>, transform_indices = @transform_7, window_bounds = array<i64: 1, 128>}, {pipeline_mode = #tpu.pipeline_mode<synchronous>, transform_indices = @transform_8, window_bounds = array<i64: 128, 128>}, {pipeline_mode = #tpu.pipeline_mode<synchronous>, transform_indices = @transform_9, window_bounds = array<i64: 1, 128>}, {pipeline_mode = #tpu.pipeline_mode<synchronous>, transform_indices = @transform_10, window_bounds = array<i64: 128, 128>}, {pipeline_mode = #tpu.pipeline_mode<synchronous>, transform_indices = @transform_11, window_bounds = array<i64: 1, 128>}, {pipeline_mode = #tpu.pipeline_mode<synchronous>, transform_indices = @transform_12, window_bounds = array<i64: 128, 128>}, {pipeline_mode = #tpu.pipeline_mode<synchronous>, transform_indices = @transform_13, window_bounds = array<i64: 1, 128>}, {transform_indices = @transform_14, window_bounds = array<i64: 16, 128>}, {transform_indices = @transform_15, window_bounds = array<i64: 16, 128>}]} {
    %c0 = arith.constant 0 : index
    %c0_0 = arith.constant 0 : index
    %0 = vector.load %arg1[%c0, %c0_0] : memref<16x128xf32, #tpu.memory_space<vmem>>, vector<16x128xf32>
    %c0_1 = arith.constant 0 : index
    %c0_2 = arith.constant 0 : index
    %1 = vector.load %arg3[%c0_1, %c0_2] : memref<128x128xf32, #tpu.memory_space<vmem>>, vector<128x128xf32>
    %c0_3 = arith.constant 0 : index
    %c0_4 = arith.constant 0 : index
    %2 = vector.load %arg4[%c0_3, %c0_4] : memref<1x128xf32, #tpu.memory_space<vmem>>, vector<1x128xf32>
    %cst = arith.constant dense<0.000000e+00> : vector<16x128xf32>
    %3 = tpu.matmul %0, %1, %cst {dimension_numbers = #tpu.dot_dimension_numbers<[1], [0], [0], [1], [0, 0, 1, 1], [], []>} : vector<16x128xf32>, vector<128x128xf32>, vector<16x128xf32> -> vector<16x128xf32>
    %4 = vector.broadcast %2 : vector<1x128xf32> to vector<16x128xf32>
    %5 = arith.addf %3, %4 : vector<16x128xf32>
    %cst_5 = arith.constant 0.000000e+00 : f32
    %6 = vector.broadcast %cst_5 : f32 to vector<16x128xf32>
    %7 = arith.maximumf %5, %6 : vector<16x128xf32>
    %c0_6 = arith.constant 0 : index
    %c0_7 = arith.constant 0 : index
    %8 = vector.load %arg5[%c0_6, %c0_7] : memref<128x128xf32, #tpu.memory_space<vmem>>, vector<128x128xf32>
    %c0_8 = arith.constant 0 : index
    %c0_9 = arith.constant 0 : index
    %9 = vector.load %arg6[%c0_8, %c0_9] : memref<1x128xf32, #tpu.memory_space<vmem>>, vector<1x128xf32>
    %cst_10 = arith.constant dense<0.000000e+00> : vector<16x128xf32>
    %10 = tpu.matmul %7, %8, %cst_10 {dimension_numbers = #tpu.dot_dimension_numbers<[1], [0], [0], [1], [0, 0, 1, 1], [], []>} : vector<16x128xf32>, vector<128x128xf32>, vector<16x128xf32> -> vector<16x128xf32>
    %11 = vector.broadcast %9 : vector<1x128xf32> to vector<16x128xf32>
    %12 = arith.addf %10, %11 : vector<16x128xf32>
    %cst_11 = arith.constant 0.000000e+00 : f32
    %13 = vector.broadcast %cst_11 : f32 to vector<16x128xf32>
    %14 = arith.maximumf %12, %13 : vector<16x128xf32>
    %c0_12 = arith.constant 0 : index
    %c0_13 = arith.constant 0 : index
    %15 = vector.load %arg7[%c0_12, %c0_13] : memref<128x128xf32, #tpu.memory_space<vmem>>, vector<128x128xf32>
    %c0_14 = arith.constant 0 : index
    %c0_15 = arith.constant 0 : index
    %16 = vector.load %arg8[%c0_14, %c0_15] : memref<1x128xf32, #tpu.memory_space<vmem>>, vector<1x128xf32>
    %cst_16 = arith.constant dense<0.000000e+00> : vector<16x128xf32>
    %17 = tpu.matmul %14, %15, %cst_16 {dimension_numbers = #tpu.dot_dimension_numbers<[1], [0], [0], [1], [0, 0, 1, 1], [], []>} : vector<16x128xf32>, vector<128x128xf32>, vector<16x128xf32> -> vector<16x128xf32>
    %18 = vector.broadcast %16 : vector<1x128xf32> to vector<16x128xf32>
    %19 = arith.addf %17, %18 : vector<16x128xf32>
    %c0_17 = arith.constant 0 : index
    %c0_18 = arith.constant 0 : index
    %20 = vector.load %arg2[%c0_17, %c0_18] : memref<16x128xf32, #tpu.memory_space<vmem>>, vector<16x128xf32>
    %c0_19 = arith.constant 0 : index
    %c0_20 = arith.constant 0 : index
    %21 = vector.load %arg9[%c0_19, %c0_20] : memref<128x128xf32, #tpu.memory_space<vmem>>, vector<128x128xf32>
    %c0_21 = arith.constant 0 : index
    %c0_22 = arith.constant 0 : index
    %22 = vector.load %arg10[%c0_21, %c0_22] : memref<1x128xf32, #tpu.memory_space<vmem>>, vector<1x128xf32>
    %cst_23 = arith.constant dense<0.000000e+00> : vector<16x128xf32>
    %23 = tpu.matmul %20, %21, %cst_23 {dimension_numbers = #tpu.dot_dimension_numbers<[1], [0], [0], [1], [0, 0, 1, 1], [], []>} : vector<16x128xf32>, vector<128x128xf32>, vector<16x128xf32> -> vector<16x128xf32>
    %24 = vector.broadcast %22 : vector<1x128xf32> to vector<16x128xf32>
    %25 = arith.addf %23, %24 : vector<16x128xf32>
    %cst_24 = arith.constant 0.000000e+00 : f32
    %26 = vector.broadcast %cst_24 : f32 to vector<16x128xf32>
    %27 = arith.maximumf %25, %26 : vector<16x128xf32>
    %c0_25 = arith.constant 0 : index
    %c0_26 = arith.constant 0 : index
    %28 = vector.load %arg11[%c0_25, %c0_26] : memref<128x128xf32, #tpu.memory_space<vmem>>, vector<128x128xf32>
    %c0_27 = arith.constant 0 : index
    %c0_28 = arith.constant 0 : index
    %29 = vector.load %arg12[%c0_27, %c0_28] : memref<1x128xf32, #tpu.memory_space<vmem>>, vector<1x128xf32>
    %cst_29 = arith.constant dense<0.000000e+00> : vector<16x128xf32>
    %30 = tpu.matmul %27, %28, %cst_29 {dimension_numbers = #tpu.dot_dimension_numbers<[1], [0], [0], [1], [0, 0, 1, 1], [], []>} : vector<16x128xf32>, vector<128x128xf32>, vector<16x128xf32> -> vector<16x128xf32>
    %31 = vector.broadcast %29 : vector<1x128xf32> to vector<16x128xf32>
    %32 = arith.addf %30, %31 : vector<16x128xf32>
    %cst_30 = arith.constant 0.000000e+00 : f32
    %33 = vector.broadcast %cst_30 : f32 to vector<16x128xf32>
    %34 = arith.maximumf %32, %33 : vector<16x128xf32>
    %c0_31 = arith.constant 0 : index
    %c0_32 = arith.constant 0 : index
    %35 = vector.load %arg13[%c0_31, %c0_32] : memref<128x128xf32, #tpu.memory_space<vmem>>, vector<128x128xf32>
    %c0_33 = arith.constant 0 : index
    %c0_34 = arith.constant 0 : index
    %36 = vector.load %arg14[%c0_33, %c0_34] : memref<1x128xf32, #tpu.memory_space<vmem>>, vector<1x128xf32>
    %cst_35 = arith.constant dense<0.000000e+00> : vector<16x128xf32>
    %37 = tpu.matmul %34, %35, %cst_35 {dimension_numbers = #tpu.dot_dimension_numbers<[1], [0], [0], [1], [0, 0, 1, 1], [], []>} : vector<16x128xf32>, vector<128x128xf32>, vector<16x128xf32> -> vector<16x128xf32>
    %38 = vector.broadcast %36 : vector<1x128xf32> to vector<16x128xf32>
    %39 = arith.addf %37, %38 : vector<16x128xf32>
    %c0_36 = arith.constant 0 : index
    %c0_37 = arith.constant 0 : index
    %40 = vector.load %arg15[%c0_36, %c0_37] : memref<16x128xf32, #tpu.memory_space<vmem>>, vector<16x128xf32>
    tpu.vector_store %arg15[%c0_36, %c0_37], %19 {strides = array<i32>} : memref<16x128xf32, #tpu.memory_space<vmem>>, vector<16x128xf32>,
    %c0_38 = arith.constant 0 : index
    %c0_39 = arith.constant 0 : index
    %41 = vector.load %arg16[%c0_38, %c0_39] : memref<16x128xf32, #tpu.memory_space<vmem>>, vector<16x128xf32>
    tpu.vector_store %arg16[%c0_38, %c0_39], %39 {strides = array<i32>} : memref<16x128xf32, #tpu.memory_space<vmem>>, vector<16x128xf32>,
    return
  }
  func.func @transform_0(%arg0: i32) -> (i32, i32) {
    %c0_i32 = arith.constant 0 : i32
    %c0_i32_0 = arith.constant 0 : i32
    return %arg0, %c0_i32 : i32, i32
  }
  func.func @transform_1(%arg0: i32) -> (i32, i32) {
    %c0_i32 = arith.constant 0 : i32
    %c0_i32_0 = arith.constant 0 : i32
    return %arg0, %c0_i32 : i32, i32
  }
  func.func @transform_2(%arg0: i32) -> (i32, i32) {
    %c0_i32 = arith.constant 0 : i32
    %c0_i32_0 = arith.constant 0 : i32
    %c0_i32_1 = arith.constant 0 : i32
    return %c0_i32, %c0_i32_0 : i32, i32
  }
  func.func @transform_3(%arg0: i32) -> (i32, i32) {
    %c0_i32 = arith.constant 0 : i32
    %c0_i32_0 = arith.constant 0 : i32
    %c0_i32_1 = arith.constant 0 : i32
    return %c0_i32, %c0_i32_0 : i32, i32
  }
  func.func @transform_4(%arg0: i32) -> (i32, i32) {
    %c0_i32 = arith.constant 0 : i32
    %c0_i32_0 = arith.constant 0 : i32
    %c0_i32_1 = arith.constant 0 : i32
    return %c0_i32, %c0_i32_0 : i32, i32
  }
  func.func @transform_5(%arg0: i32) -> (i32, i32) {
    %c0_i32 = arith.constant 0 : i32
    %c0_i32_0 = arith.constant 0 : i32
    %c0_i32_1 = arith.constant 0 : i32
    return %c0_i32, %c0_i32_0 : i32, i32
  }
  func.func @transform_6(%arg0: i32) -> (i32, i32) {
    %c0_i32 = arith.constant 0 : i32
    %c0_i32_0 = arith.constant 0 : i32
    %c0_i32_1 = arith.constant 0 : i32
    return %c0_i32, %c0_i32_0 : i32, i32
  }
  func.func @transform_7(%arg0: i32) -> (i32, i32) {
    %c0_i32 = arith.constant 0 : i32
    %c0_i32_0 = arith.constant 0 : i32
    %c0_i32_1 = arith.constant 0 : i32
    return %c0_i32, %c0_i32_0 : i32, i32
  }
  func.func @transform_8(%arg0: i32) -> (i32, i32) {
    %c0_i32 = arith.constant 0 : i32
    %c0_i32_0 = arith.constant 0 : i32
    %c0_i32_1 = arith.constant 0 : i32
    return %c0_i32, %c0_i32_0 : i32, i32
  }
  func.func @transform_9(%arg0: i32) -> (i32, i32) {
    %c0_i32 = arith.constant 0 : i32
    %c0_i32_0 = arith.constant 0 : i32
    %c0_i32_1 = arith.constant 0 : i32
    return %c0_i32, %c0_i32_0 : i32, i32
  }
  func.func @transform_10(%arg0: i32) -> (i32, i32) {
    %c0_i32 = arith.constant 0 : i32
    %c0_i32_0 = arith.constant 0 : i32
    %c0_i32_1 = arith.constant 0 : i32
    return %c0_i32, %c0_i32_0 : i32, i32
  }
  func.func @transform_11(%arg0: i32) -> (i32, i32) {
    %c0_i32 = arith.constant 0 : i32
    %c0_i32_0 = arith.constant 0 : i32
    %c0_i32_1 = arith.constant 0 : i32
    return %c0_i32, %c0_i32_0 : i32, i32
  }
  func.func @transform_12(%arg0: i32) -> (i32, i32) {
    %c0_i32 = arith.constant 0 : i32
    %c0_i32_0 = arith.constant 0 : i32
    %c0_i32_1 = arith.constant 0 : i32
    return %c0_i32, %c0_i32_0 : i32, i32
  }
  func.func @transform_13(%arg0: i32) -> (i32, i32) {
    %c0_i32 = arith.constant 0 : i32
    %c0_i32_0 = arith.constant 0 : i32
    %c0_i32_1 = arith.constant 0 : i32
    return %c0_i32, %c0_i32_0 : i32, i32
  }
  func.func @transform_14(%arg0: i32) -> (i32, i32) {
    %c0_i32 = arith.constant 0 : i32
    %c0_i32_0 = arith.constant 0 : i32
    return %arg0, %c0_i32 : i32, i32
  }
  func.func @transform_15(%arg0: i32) -> (i32, i32) {
    %c0_i32 = arith.constant 0 : i32
    %c0_i32_0 = arith.constant 0 : i32
    return %arg0, %c0_i32 : i32, i32
  }
}

</mosaic_0001>

<llo_original>
// kernel: dnce_forward.3
$region0: #{dnce_forward.3}
  #allocation0 [shape = 'u32[]', space=smem, size = 0x4, offset = 0x4, fixed_abs, tag = 'smem constant byte address 0x4 - core index']
  #allocation1 [shape = 'u32[144,128]{1,0:T(1,128)}', space=vmem, size = 0x12000, scoped, tag = 'internal scratch']
  %s0 = inlined_call_operand.vmem [shape: f32[16,128], index: 0, kind: input, shape index: {}]
  %s1 = inlined_call_operand.vmem [shape: f32[16,128], index: 1, kind: input, shape index: {}]
  %s2 = inlined_call_operand.vmem [shape: f32[8,128], index: 2, kind: output, shape index: {}]
  %s3 = sld [smem:[#allocation0]]
  $region18: #{dnce_forward.3} parent=0
    _
  %s5 = ssub.s32 1, %s3
  %s6 = scalar_select 0, %s5, %s3
  // Predicated region
  $region2: #{dnce_forward.3} parent=0 // pred_check
    _
  $region3: #{dnce_forward.3} parent=0 // pred_check_branch
    %8 = sbr.rel (0) target = $region5
  $region4: #{dnce_forward.3} parent=0 // pred_region
    _
  $region5: #{dnce_forward.3} parent=0 // pred_fallthru
    _
  // Predicated region
  $region6: #{dnce_forward.3} parent=0 // pred_check
    _
  $region7: #{dnce_forward.3} parent=0 // pred_check_branch
    %10 = sbr.rel (0) target = $region9
  $region8: #{dnce_forward.3} parent=0 // pred_region
    _
  $region9: #{dnce_forward.3} parent=0 // pred_fallthru
    _
  %s11 = smul.u32 0, 16
  %s12 = scalar_lea.vmem %s0, %s11
  %v13 = vld [vmem:[%s12] sm:$0xff]
  %v14 = vld [vmem:[%s12 + $0x8] sm:$0xff]
  %s15 = scalar_lea.vmem %s1, %s11
  %v16 = vld [vmem:[%s15] sm:$0xff]
  %v17 = vld [vmem:[%s15 + $0x8] sm:$0xff]
  %v18 = vld [vmem:[%s0] sm:$0xff]
  %v19 = vld [vmem:[%s0 + $0x8] sm:$0xff]
  %v20 = vld [vmem:[%s1] sm:$0xff]
  %v21 = vld [vmem:[%s1 + $0x8] sm:$0xff]
  %v22 = vmul.f32 %v13, %v16
  %v23 = vmul.f32 %v14, %v17
  %24 = vadd.xlane.f32.xlu0 %v22
  %v25 = vpop.xlane.xlu0 %24
  %26 = vadd.xlane.f32.xlu0 %v23
  %v27 = vpop.xlane.xlu0 %26
  %v28 = vmul.f32 %v25, 1.442695
  %v29 = vpow.pop %v28
  %v30 = vmul.f32 %v27, 1.442695
  %v31 = vpow.pop %v30
  %v32 = vmul.f32 %v13, %v13
  %v33 = vmul.f32 %v14, %v14
  %34 = vadd.xlane.f32.xlu0 %v32
  %v35 = vpop.xlane.xlu0 %34
  %36 = vadd.xlane.f32.xlu0 %v33
  %v37 = vpop.xlane.xlu0 %36
  %v38 = vmul.f32 %v35, 1.442695
  %v39 = vpow.pop %v38
  %v40 = vmul.f32 %v37, 1.442695
  %v41 = vpow.pop %v40
  %v42 = vmul.f32 %v16, %v16
  %v43 = vmul.f32 %v17, %v17
  %44 = vadd.xlane.f32.xlu0 %v42
  %v45 = vpop.xlane.xlu0 %44
  %46 = vadd.xlane.f32.xlu0 %v43
  %v47 = vpop.xlane.xlu0 %46
  %v48 = vmul.f32 %v45, 1.442695
  %v49 = vpow.pop %v48
  %v50 = vmul.f32 %v47, 1.442695
  %v51 = vpow.pop %v50
  %52 = vmatprep.subr.mxu0 0.0
  %53 = vmatpush1.xpose.msra.mxu0 %v18
  %54 = vmatprep.subr.mxu0 0.0
  %55 = vmatpush1.xpose.msra.mxu0 %v19
  %56 = vmatprep.subr.mxu0 0.0
  %57 = vmatpush1.xpose.msra.mxu0 0.0
  %58 = vmatprep.subr.mxu0 0.0
  %59 = vmatpush1.xpose.msra.mxu0 0.0
  %60 = vmatprep.subr.mxu0 0.0
  %61 = vmatpush1.xpose.msra.mxu0 0.0
  %62 = vmatprep.subr.mxu0 0.0
  %63 = vmatpush1.xpose.msra.mxu0 0.0
  %64 = vmatprep.subr.mxu0 0.0
  %65 = vmatpush1.xpose.msra.mxu0 0.0
  %66 = vmatprep.subr.mxu0 0.0
  %67 = vmatpush1.xpose.msra.mxu0 0.0
  %68 = vmatprep.subr.mxu0 0.0
  %69 = vmatpush1.xpose.msra.mxu0 0.0
  %70 = vmatprep.subr.mxu0 0.0
  %71 = vmatpush1.xpose.msra.mxu0 0.0
  %72 = vmatprep.subr.mxu0 0.0
  %73 = vmatpush1.xpose.msra.mxu0 0.0
  %74 = vmatprep.subr.mxu0 0.0
  %75 = vmatpush1.xpose.msra.mxu0 0.0
  %76 = vmatprep.subr.mxu0 0.0
  %77 = vmatpush1.xpose.msra.mxu0 0.0
  %78 = vmatprep.subr.mxu0 0.0
  %79 = vmatpush1.xpose.msra.mxu0 0.0
  %80 = vmatprep.subr.mxu0 0.0
  %81 = vmatpush1.xpose.msra.mxu0 0.0
  %82 = vmatprep.subr.mxu0 0.0
  %83 = vmatpush1.xpose.msra.mxu0 0.0
  %84 = vmatprep.subr.mxu0 0.0
  %85 = vmatpush1.xpose.msra.mxu0 0.0
  %86 = vmatprep.subr.mxu0 0.0
  %87 = vmatpush1.xpose.msra.mxu0 0.0
  %88 = vmatprep.subr.mxu0 0.0
  %89 = vmatpush1.xpose.msra.mxu0 0.0
  %90 = vmatprep.subr.mxu0 0.0
  %91 = vmatpush1.xpose.msra.mxu0 0.0
  %92 = vmatprep.subr.mxu0 0.0
  %93 = vmatpush1.xpose.msra.mxu0 0.0
  %94 = vmatprep.subr.mxu0 0.0
  %95 = vmatpush1.xpose.msra.mxu0 0.0
  %96 = vmatprep.subr.mxu0 0.0
  %97 = vmatpush1.xpose.msra.mxu0 0.0
  %98 = vmatprep.subr.mxu0 0.0
  %99 = vmatpush1.xpose.msra.mxu0 0.0
  %100 = vmatprep.subr.mxu0 0.0
  %101 = vmatpush1.xpose.msra.mxu0 0.0
  %102 = vmatprep.subr.mxu0 0.0
  %103 = vmatpush1.xpose.msra.mxu0 0.0
  %104 = vmatprep.subr.mxu0 0.0
  %105 = vmatpush1.xpose.msra.mxu0 0.0
  %106 = vmatprep.subr.mxu0 0.0
  %107 = vmatpush1.xpose.msra.mxu0 0.0
  %108 = vmatprep.subr.mxu0 0.0
  %109 = vmatpush1.xpose.msra.mxu0 0.0
  %110 = vmatprep.subr.mxu0 0.0
  %111 = vmatpush1.xpose.msra.mxu0 0.0
  %112 = vmatprep.subr.mxu0 0.0
  %113 = vmatpush1.xpose.msra.mxu0 0.0
  %114 = vmatprep.subr.mxu0 0.0
  %115 = vmatpush1.xpose.msra.mxu0 0.0
  %116 = vmatprep.mubr.f32.mxu0 0.0
  %117 = vmatmul.mubr.f32.gmra.mrb[0].mxu0 %v13
  %v118 = vpop.f32.mrb[0].mxu0
  %v119 = vadd.f32 0.0, %v118
  %v120 = vpop.f32.mrb[0].mxu0
  %121 = vmatprep.mubr.f32.mxu0 0.0
  %122 = vmatmul.mubr.f32.gmra.mrb[0].mxu0 %v14
  %v123 = vpop.f32.mrb[0].mxu0
  %v124 = vadd.f32 0.0, %v123
  %v125 = vpop.f32.mrb[0].mxu0
  %126 = vdwg.mxu0
  %127 = vmatprep.subr.mxu0 0.0
  %128 = vmatpush1.xpose.msra.mxu0 %v20
  %129 = vmatprep.subr.mxu0 0.0
  %130 = vmatpush1.xpose.msra.mxu0 %v21
  %131 = vmatprep.subr.mxu0 0.0
  %132 = vmatpush1.xpose.msra.mxu0 0.0
  %133 = vmatprep.subr.mxu0 0.0
  %134 = vmatpush1.xpose.msra.mxu0 0.0
  %135 = vmatprep.subr.mxu0 0.0
  %136 = vmatpush1.xpose.msra.mxu0 0.0
  %137 = vmatprep.subr.mxu0 0.0
  %138 = vmatpush1.xpose.msra.mxu0 0.0
  %139 = vmatprep.subr.mxu0 0.0
  %140 = vmatpush1.xpose.msra.mxu0 0.0
  %141 = vmatprep.subr.mxu0 0.0
  %142 = vmatpush1.xpose.msra.mxu0 0.0
  %143 = vmatprep.subr.mxu0 0.0
  %144 = vmatpush1.xpose.msra.mxu0 0.0
  %145 = vmatprep.subr.mxu0 0.0
  %146 = vmatpush1.xpose.msra.mxu0 0.0
  %147 = vmatprep.subr.mxu0 0.0
  %148 = vmatpush1.xpose.msra.mxu0 0.0
  %149 = vmatprep.subr.mxu0 0.0
  %150 = vmatpush1.xpose.msra.mxu0 0.0
  %151 = vmatprep.subr.mxu0 0.0
  %152 = vmatpush1.xpose.msra.mxu0 0.0
  %153 = vmatprep.subr.mxu0 0.0
  %154 = vmatpush1.xpose.msra.mxu0 0.0
  %155 = vmatprep.subr.mxu0 0.0
  %156 = vmatpush1.xpose.msra.mxu0 0.0
  %157 = vmatprep.subr.mxu0 0.0
  %158 = vmatpush1.xpose.msra.mxu0 0.0
  %159 = vmatprep.subr.mxu0 0.0
  %160 = vmatpush1.xpose.msra.mxu0 0.0
  %161 = vmatprep.subr.mxu0 0.0
  %162 = vmatpush1.xpose.msra.mxu0 0.0
  %163 = vmatprep.subr.mxu0 0.0
  %164 = vmatpush1.xpose.msra.mxu0 0.0
  %165 = vmatprep.subr.mxu0 0.0
  %166 = vmatpush1.xpose.msra.mxu0 0.0
  %167 = vmatprep.subr.mxu0 0.0
  %168 = vmatpush1.xpose.msra.mxu0 0.0
  %169 = vmatprep.subr.mxu0 0.0
  %170 = vmatpush1.xpose.msra.mxu0 0.0
  %171 = vmatprep.subr.mxu0 0.0
  %172 = vmatpush1.xpose.msra.mxu0 0.0
  %173 = vmatprep.subr.mxu0 0.0
  %174 = vmatpush1.xpose.msra.mxu0 0.0
  %175 = vmatprep.subr.mxu0 0.0
  %176 = vmatpush1.xpose.msra.mxu0 0.0
  %177 = vmatprep.subr.mxu0 0.0
  %178 = vmatpush1.xpose.msra.mxu0 0.0
  %179 = vmatprep.subr.mxu0 0.0
  %180 = vmatpush1.xpose.msra.mxu0 0.0
  %181 = vmatprep.subr.mxu0 0.0
  %182 = vmatpush1.xpose.msra.mxu0 0.0
  %183 = vmatprep.subr.mxu0 0.0
  %184 = vmatpush1.xpose.msra.mxu0 0.0
  %185 = vmatprep.subr.mxu0 0.0
  %186 = vmatpush1.xpose.msra.mxu0 0.0
  %187 = vmatprep.subr.mxu0 0.0
  %188 = vmatpush1.xpose.msra.mxu0 0.0
  %189 = vmatprep.subr.mxu0 0.0
  %190 = vmatpush1.xpose.msra.mxu0 0.0
  %191 = vmatprep.mubr.f32.mxu0 0.0
  %192 = vmatmul.mubr.f32.gmra.mrb[0].mxu0 %v13
  %v193 = vpop.f32.mrb[0].mxu0
  %v194 = vadd.f32 0.0, %v193
  %v195 = vpop.f32.mrb[0].mxu0
  %196 = vmatprep.mubr.f32.mxu0 0.0
  %197 = vmatmul.mubr.f32.gmra.mrb[0].mxu0 %v14
  %v198 = vpop.f32.mrb[0].mxu0
  %v199 = vadd.f32 0.0, %v198
  %v200 = vpop.f32.mrb[0].mxu0
  %201 = vdwg.mxu0
  %v202 = vmul.f32 %v119, 1.442695
  %v203 = vpow.pop %v202
  %v204 = vmul.f32 %v124, 1.442695
  %v205 = vpow.pop %v204
  %vm206 = vcmask 130048
  %v207 = vsel %vm206, %v203, 0.0
  %208 = vadd.xlane.f32.xlu0 %v207
  %v209 = vpop.xlane.xlu0 %208
  %v210 = vsel %vm206, %v205, 0.0
  %211 = vadd.xlane.f32.xlu0 %v210
  %v212 = vpop.xlane.xlu0 %211
  %v213 = vmul.f32 %v194, 1.442695
  %v214 = vpow.pop %v213
  %v215 = vmul.f32 %v199, 1.442695
  %v216 = vpow.pop %v215
  %v217 = vsel %vm206, %v214, 0.0
  %218 = vadd.xlane.f32.xlu0 %v217
  %v219 = vpop.xlane.xlu0 %218
  %v220 = vsel %vm206, %v216, 0.0
  %221 = vadd.xlane.f32.xlu0 %v220
  %v222 = vpop.xlane.xlu0 %221
  %v223 = vadd.f32 %v209, %v219
  %v224 = vadd.f32 %v212, %v222
  %v225 = vsub.f32 %v223, %v39
  %v226 = vsub.f32 %v224, %v41
  %v227 = vsub.f32 %v225, %v29
  %v228 = vsub.f32 %v226, %v31
  %v229 = vmul.f32 %v29, 3.0
  %v230 = vmul.f32 %v31, 3.0
  %v231 = vsub.f32 %v227, %v229
  %v232 = vsub.f32 %v228, %v230
  %v233 = vmul.f32 %v231, 1.1111112
  %v234 = vmul.f32 %v232, 1.1111112
  %v235 = vmax.f32 %v233, 11.036384
  %v236 = vmax.f32 %v234, 11.036384
  %v237 = vadd.f32 %v29, %v235
  %v238 = vadd.f32 %v31, %v236
  %v239 = vlog2.pop %v237
  %v240 = vmul.f32 %v239, 0.6931472
  %v241 = vlog2.pop %v238
  %v242 = vmul.f32 %v241, 0.6931472
  %v243 = vsub.f32 %v25, %v240
  %v244 = vsub.f32 %v27, %v242
  %245 = vmatprep.subr.mxu0 0.0
  %246 = vmatpush1.xpose.msra.mxu0 %v18
  %247 = vmatprep.subr.mxu0 0.0
  %248 = vmatpush1.xpose.msra.mxu0 %v19
  %249 = vmatprep.subr.mxu0 0.0
  %250 = vmatpush1.xpose.msra.mxu0 0.0
  %251 = vmatprep.subr.mxu0 0.0
  %252 = vmatpush1.xpose.msra.mxu0 0.0
  %253 = vmatprep.subr.mxu0 0.0
  %254 = vmatpush1.xpose.msra.mxu0 0.0
  %255 = vmatprep.subr.mxu0 0.0
  %256 = vmatpush1.xpose.msra.mxu0 0.0
  %257 = vmatprep.subr.mxu0 0.0
  %258 = vmatpush1.xpose.msra.mxu0 0.0
  %259 = vmatprep.subr.mxu0 0.0
  %260 = vmatpush1.xpose.msra.mxu0 0.0
  %261 = vmatprep.subr.mxu0 0.0
  %262 = vmatpush1.xpose.msra.mxu0 0.0
  %263 = vmatprep.subr.mxu0 0.0
  %264 = vmatpush1.xpose.msra.mxu0 0.0
  %265 = vmatprep.subr.mxu0 0.0
  %266 = vmatpush1.xpose.msra.mxu0 0.0
  %267 = vmatprep.subr.mxu0 0.0
  %268 = vmatpush1.xpose.msra.mxu0 0.0
  %269 = vmatprep.subr.mxu0 0.0
  %270 = vmatpush1.xpose.msra.mxu0 0.0
  %271 = vmatprep.subr.mxu0 0.0
  %272 = vmatpush1.xpose.msra.mxu0 0.0
  %273 = vmatprep.subr.mxu0 0.0
  %274 = vmatpush1.xpose.msra.mxu0 0.0
  %275 = vmatprep.subr.mxu0 0.0
  %276 = vmatpush1.xpose.msra.mxu0 0.0
  %277 = vmatprep.subr.mxu0 0.0
  %278 = vmatpush1.xpose.msra.mxu0 0.0
  %279 = vmatprep.subr.mxu0 0.0
  %280 = vmatpush1.xpose.msra.mxu0 0.0
  %281 = vmatprep.subr.mxu0 0.0
  %282 = vmatpush1.xpose.msra.mxu0 0.0
  %283 = vmatprep.subr.mxu0 0.0
  %284 = vmatpush1.xpose.msra.mxu0 0.0
  %285 = vmatprep.subr.mxu0 0.0
  %286 = vmatpush1.xpose.msra.mxu0 0.0
  %287 = vmatprep.subr.mxu0 0.0
  %288 = vmatpush1.xpose.msra.mxu0 0.0
  %289 = vmatprep.subr.mxu0 0.0
  %290 = vmatpush1.xpose.msra.mxu0 0.0
  %291 = vmatprep.subr.mxu0 0.0
  %292 = vmatpush1.xpose.msra.mxu0 0.0
  %293 = vmatprep.subr.mxu0 0.0
  %294 = vmatpush1.xpose.msra.mxu0 0.0
  %295 = vmatprep.subr.mxu0 0.0
  %296 = vmatpush1.xpose.msra.mxu0 0.0
  %297 = vmatprep.subr.mxu0 0.0
  %298 = vmatpush1.xpose.msra.mxu0 0.0
  %299 = vmatprep.subr.mxu0 0.0
  %300 = vmatpush1.xpose.msra.mxu0 0.0
  %301 = vmatprep.subr.mxu0 0.0
  %302 = vmatpush1.xpose.msra.mxu0 0.0
  %303 = vmatprep.subr.mxu0 0.0
  %304 = vmatpush1.xpose.msra.mxu0 0.0
  %305 = vmatprep.subr.mxu0 0.0
  %306 = vmatpush1.xpose.msra.mxu0 0.0
  %307 = vmatprep.subr.mxu0 0.0
  %308 = vmatpush1.xpose.msra.mxu0 0.0
  %309 = vmatprep.mubr.f32.mxu0 0.0
  %310 = vmatmul.mubr.f32.gmra.mrb[0].mxu0 %v16
  %v311 = vpop.f32.mrb[0].mxu0
  %v312 = vadd.f32 0.0, %v311
  %v313 = vpop.f32.mrb[0].mxu0
  %314 = vmatprep.mubr.f32.mxu0 0.0
  %315 = vmatmul.mubr.f32.gmra.mrb[0].mxu0 %v17
  %v316 = vpop.f32.mrb[0].mxu0
  %v317 = vadd.f32 0.0, %v316
  %v318 = vpop.f32.mrb[0].mxu0
  %319 = vdwg.mxu0
  %320 = vmatprep.subr.mxu0 0.0
  %321 = vmatpush1.xpose.msra.mxu0 %v20
  %322 = vmatprep.subr.mxu0 0.0
  %323 = vmatpush1.xpose.msra.mxu0 %v21
  %324 = vmatprep.subr.mxu0 0.0
  %325 = vmatpush1.xpose.msra.mxu0 0.0
  %326 = vmatprep.subr.mxu0 0.0
  %327 = vmatpush1.xpose.msra.mxu0 0.0
  %328 = vmatprep.subr.mxu0 0.0
  %329 = vmatpush1.xpose.msra.mxu0 0.0
  %330 = vmatprep.subr.mxu0 0.0
  %331 = vmatpush1.xpose.msra.mxu0 0.0
  %332 = vmatprep.subr.mxu0 0.0
  %333 = vmatpush1.xpose.msra.mxu0 0.0
  %334 = vmatprep.subr.mxu0 0.0
  %335 = vmatpush1.xpose.msra.mxu0 0.0
  %336 = vmatprep.subr.mxu0 0.0
  %337 = vmatpush1.xpose.msra.mxu0 0.0
  %338 = vmatprep.subr.mxu0 0.0
  %339 = vmatpush1.xpose.msra.mxu0 0.0
  %340 = vmatprep.subr.mxu0 0.0
  %341 = vmatpush1.xpose.msra.mxu0 0.0
  %342 = vmatprep.subr.mxu0 0.0
  %343 = vmatpush1.xpose.msra.mxu0 0.0
  %344 = vmatprep.subr.mxu0 0.0
  %345 = vmatpush1.xpose.msra.mxu0 0.0
  %346 = vmatprep.subr.mxu0 0.0
  %347 = vmatpush1.xpose.msra.mxu0 0.0
  %348 = vmatprep.subr.mxu0 0.0
  %349 = vmatpush1.xpose.msra.mxu0 0.0
  %350 = vmatprep.subr.mxu0 0.0
  %351 = vmatpush1.xpose.msra.mxu0 0.0
  %352 = vmatprep.subr.mxu0 0.0
  %353 = vmatpush1.xpose.msra.mxu0 0.0
  %354 = vmatprep.subr.mxu0 0.0
  %355 = vmatpush1.xpose.msra.mxu0 0.0
  %356 = vmatprep.subr.mxu0 0.0
  %357 = vmatpush1.xpose.msra.mxu0 0.0
  %358 = vmatprep.subr.mxu0 0.0
  %359 = vmatpush1.xpose.msra.mxu0 0.0
  %360 = vmatprep.subr.mxu0 0.0
  %361 = vmatpush1.xpose.msra.mxu0 0.0
  %362 = vmatprep.subr.mxu0 0.0
  %363 = vmatpush1.xpose.msra.mxu0 0.0
  %364 = vmatprep.subr.mxu0 0.0
  %365 = vmatpush1.xpose.msra.mxu0 0.0
  %366 = vmatprep.subr.mxu0 0.0
  %367 = vmatpush1.xpose.msra.mxu0 0.0
  %368 = vmatprep.subr.mxu0 0.0
  %369 = vmatpush1.xpose.msra.mxu0 0.0
  %370 = vmatprep.subr.mxu0 0.0
  %371 = vmatpush1.xpose.msra.mxu0 0.0
  %372 = vmatprep.subr.mxu0 0.0
  %373 = vmatpush1.xpose.msra.mxu0 0.0
  %374 = vmatprep.subr.mxu0 0.0
  %375 = vmatpush1.xpose.msra.mxu0 0.0
  %376 = vmatprep.subr.mxu0 0.0
  %377 = vmatpush1.xpose.msra.mxu0 0.0
  %378 = vmatprep.subr.mxu0 0.0
  %379 = vmatpush1.xpose.msra.mxu0 0.0
  %380 = vmatprep.subr.mxu0 0.0
  %381 = vmatpush1.xpose.msra.mxu0 0.0
  %382 = vmatprep.subr.mxu0 0.0
  %383 = vmatpush1.xpose.msra.mxu0 0.0
  %384 = vmatprep.mubr.f32.mxu0 0.0
  %385 = vmatmul.mubr.f32.gmra.mrb[0].mxu0 %v16
  %v386 = vpop.f32.mrb[0].mxu0
  %v387 = vadd.f32 0.0, %v386
  %v388 = vpop.f32.mrb[0].mxu0
  %389 = vmatprep.mubr.f32.mxu0 0.0
  %390 = vmatmul.mubr.f32.gmra.mrb[0].mxu0 %v17
  %v391 = vpop.f32.mrb[0].mxu0
  %v392 = vadd.f32 0.0, %v391
  %v393 = vpop.f32.mrb[0].mxu0
  %394 = vdwg.mxu0
  %v395 = vmul.f32 %v312, 1.442695
  %v396 = vpow.pop %v395
  %v397 = vmul.f32 %v317, 1.442695
  %v398 = vpow.pop %v397
  %v399 = vsel %vm206, %v396, 0.0
  %400 = vadd.xlane.f32.xlu0 %v399
  %v401 = vpop.xlane.xlu0 %400
  %v402 = vsel %vm206, %v398, 0.0
  %403 = vadd.xlane.f32.xlu0 %v402
  %v404 = vpop.xlane.xlu0 %403
  %v405 = vmul.f32 %v387, 1.442695
  %v406 = vpow.pop %v405
  %v407 = vmul.f32 %v392, 1.442695
  %v408 = vpow.pop %v407
  %v409 = vsel %vm206, %v406, 0.0
  %410 = vadd.xlane.f32.xlu0 %v409
  %v411 = vpop.xlane.xlu0 %410
  %v412 = vsel %vm206, %v408, 0.0
  %413 = vadd.xlane.f32.xlu0 %v412
  %v414 = vpop.xlane.xlu0 %413
  %v415 = vadd.f32 %v401, %v411
  %v416 = vadd.f32 %v404, %v414
  %v417 = vsub.f32 %v415, %v49
  %v418 = vsub.f32 %v416, %v51
  %v419 = vsub.f32 %v417, %v29
  %v420 = vsub.f32 %v418, %v31
  %v421 = vsub.f32 %v419, %v229
  %v422 = vsub.f32 %v420, %v230
  %v423 = vmul.f32 %v421, 1.1111112
  %v424 = vmul.f32 %v422, 1.1111112
  %v425 = vmax.f32 %v423, 11.036384
  %v426 = vmax.f32 %v424, 11.036384
  %v427 = vadd.f32 %v29, %v425
  %v428 = vadd.f32 %v31, %v426
  %v429 = vlog2.pop %v427
  %v430 = vmul.f32 %v429, 0.6931472
  %v431 = vlog2.pop %v428
  %v432 = vmul.f32 %v431, 0.6931472
  %v433 = vsub.f32 %v25, %v430
  %v434 = vsub.f32 %v27, %v432
  %v435 = vadd.f32 %v243, %v433
  %v436 = vadd.f32 %v244, %v434
  %vm437 = vcmask 7168
  %v438 = vsel %vm437, %v435, 0.0
  %v439 = vsel %vm437, %v436, 0.0
  %v440 = vadd.f32 %v438, %v439
  %441 = vadd.xlane.f32.xlu0 %v440
  %v442 = vpop.xlane.xlu0 %441
  %v443 = vrot.slane %v442, 4
  %v444 = vadd.f32 %v442, %v443
  %v445 = vrot.slane %v444, 2
  %v446 = vadd.f32 %v444, %v445
  %v447 = vrot.slane %v446, 1
  %v448 = vadd.f32 %v446, %v447
  %s449 = vtos %v448
  %v450 = vstv %s449
  %v451 = vadd.f32 %v450, 0.0
  %452 = vst [vmem:[%s2] sm:$0xff] %v451
  // Predicated region
  $region10: #{dnce_forward.3} parent=0 // pred_check
    _
  $region11: #{dnce_forward.3} parent=0 // pred_check_branch
    %454 = sbr.rel (0) target = $region13
  $region12: #{dnce_forward.3} parent=0 // pred_region
    _
  $region13: #{dnce_forward.3} parent=0 // pred_fallthru
    _
  // Predicated region
  $region14: #{dnce_forward.3} parent=0 // pred_check
    _
  $region15: #{dnce_forward.3} parent=0 // pred_check_branch
    %456 = sbr.rel (0) target = $region17
  $region16: #{dnce_forward.3} parent=0 // pred_region
    _
  $region17: #{dnce_forward.3} parent=0 // pred_fallthru
    _

// kernel: dnce_forward.2
$region0: #{dnce_forward.2}
  #allocation0 [shape = 'u32[]', space=smem, size = 0x4, offset = 0x4, fixed_abs, tag = 'smem constant byte address 0x4 - core index']
  #allocation1 [shape = 'u32[144,128]{1,0:T(1,128)}', space=vmem, size = 0x12000, scoped, tag = 'internal scratch']
  %s0 = inlined_call_operand.vmem [shape: f32[16,128], index: 0, kind: input, shape index: {}]
  %s1 = inlined_call_operand.vmem [shape: f32[16,128], index: 1, kind: input, shape index: {}]
  %s2 = inlined_call_operand.vmem [shape: f32[128,128], index: 2, kind: input, shape index: {}]
  %s3 = inlined_call_operand.vmem [shape: f32[1,128], index: 3, kind: input, shape index: {}]
  %s4 = inlined_call_operand.vmem [shape: f32[128,128], index: 4, kind: input, shape index: {}]
  %s5 = inlined_call_operand.vmem [shape: f32[1,128], index: 5, kind: input, shape index: {}]
  %s6 = inlined_call_operand.vmem [shape: f32[128,128], index: 6, kind: input, shape index: {}]
  %s7 = inlined_call_operand.vmem [shape: f32[1,128], index: 7, kind: input, shape index: {}]
  %s8 = inlined_call_operand.vmem [shape: f32[128,128], index: 8, kind: input, shape index: {}]
  %s9 = inlined_call_operand.vmem [shape: f32[1,128], index: 9, kind: input, shape index: {}]
  %s10 = inlined_call_operand.vmem [shape: f32[128,128], index: 10, kind: input, shape index: {}]
  %s11 = inlined_call_operand.vmem [shape: f32[1,128], index: 11, kind: input, shape index: {}]
  %s12 = inlined_call_operand.vmem [shape: f32[128,128], index: 12, kind: input, shape index: {}]
  %s13 = inlined_call_operand.vmem [shape: f32[1,128], index: 13, kind: input, shape index: {}]
  %s14 = inlined_call_operand.vmem [shape: f32[16,128], index: 14, kind: output, shape index: {0}]
  %s15 = inlined_call_operand.vmem [shape: f32[16,128], index: 15, kind: output, shape index: {1}]
  %16 = xla_tuple %s14, %s15
  %s17 = sld [smem:[#allocation0]]
  $region74: #{dnce_forward.2} parent=0
    _
  %s19 = ssub.s32 1, %s17
  %s20 = scalar_select 0, %s19, %s17
  // Predicated region
  $region2: #{dnce_forward.2} parent=0 // pred_check
    _
  $region3: #{dnce_forward.2} parent=0 // pred_check_branch
    %22 = sbr.rel (0) target = $region5
  $region4: #{dnce_forward.2} parent=0 // pred_region
    _
  $region5: #{dnce_forward.2} parent=0 // pred_fallthru
    _
  // Predicated region
  $region6: #{dnce_forward.2} parent=0 // pred_check
    _
  $region7: #{dnce_forward.2} parent=0 // pred_check_branch
    %24 = sbr.rel (0) target = $region9
  $region8: #{dnce_forward.2} parent=0 // pred_region
    _
  $region9: #{dnce_forward.2} parent=0 // pred_fallthru
    _
  // Predicated region
  $region10: #{dnce_forward.2} parent=0 // pred_check
    _
  $region11: #{dnce_forward.2} parent=0 // pred_check_branch
    %26 = sbr.rel (0) target = $region13
  $region12: #{dnce_forward.2} parent=0 // pred_region
    _
  $region13: #{dnce_forward.2} parent=0 // pred_fallthru
    _
  // Predicated region
  $region14: #{dnce_forward.2} parent=0 // pred_check
    _
  $region15: #{dnce_forward.2} parent=0 // pred_check_branch
    %28 = sbr.rel (0) target = $region17
  $region16: #{dnce_forward.2} parent=0 // pred_region
    _
  $region17: #{dnce_forward.2} parent=0 // pred_fallthru
    _
  // Predicated region
  $region18: #{dnce_forward.2} parent=0 // pred_check
    _
  $region19: #{dnce_forward.2} parent=0 // pred_check_branch
    %30 = sbr.rel (0) target = $region21
  $region20: #{dnce_forward.2} parent=0 // pred_region
    _
  $region21: #{dnce_forward.2} parent=0 // pred_fallthru
    _
  // Predicated region
  $region22: #{dnce_forward.2} parent=0 // pred_check
    _
  $region23: #{dnce_forward.2} parent=0 // pred_check_branch
    %32 = sbr.rel (0) target = $region25
  $region24: #{dnce_forward.2} parent=0 // pred_region
    _
  $region25: #{dnce_forward.2} parent=0 // pred_fallthru
    _
  // Predicated region
  $region26: #{dnce_forward.2} parent=0 // pred_check
    _
  $region27: #{dnce_forward.2} parent=0 // pred_check_branch
    %34 = sbr.rel (0) target = $region29
  $region28: #{dnce_forward.2} parent=0 // pred_region
    _
  $region29: #{dnce_forward.2} parent=0 // pred_fallthru
    _
  // Predicated region
  $region30: #{dnce_forward.2} parent=0 // pred_check
    _
  $region31: #{dnce_forward.2} parent=0 // pred_check_branch
    %36 = sbr.rel (0) target = $region33
  $region32: #{dnce_forward.2} parent=0 // pred_region
    _
  $region33: #{dnce_forward.2} parent=0 // pred_fallthru
    _
  // Predicated region
  $region34: #{dnce_forward.2} parent=0 // pred_check
    _
  $region35: #{dnce_forward.2} parent=0 // pred_check_branch
    %38 = sbr.rel (0) target = $region37
  $region36: #{dnce_forward.2} parent=0 // pred_region
    _
  $region37: #{dnce_forward.2} parent=0 // pred_fallthru
    _
  // Predicated region
  $region38: #{dnce_forward.2} parent=0 // pred_check
    _
  $region39: #{dnce_forward.2} parent=0 // pred_check_branch
    %40 = sbr.rel (0) target = $region41
  $region40: #{dnce_forward.2} parent=0 // pred_region
    _
  $region41: #{dnce_forward.2} parent=0 // pred_fallthru
    _
  // Predicated region
  $region42: #{dnce_forward.2} parent=0 // pred_check
    _
  $region43: #{dnce_forward.2} parent=0 // pred_check_branch
    %42 = sbr.rel (0) target = $region45
  $region44: #{dnce_forward.2} parent=0 // pred_region
    _
  $region45: #{dnce_forward.2} parent=0 // pred_fallthru
    _
  // Predicated region
  $region46: #{dnce_forward.2} parent=0 // pred_check
    _
  $region47: #{dnce_forward.2} parent=0 // pred_check_branch
    %44 = sbr.rel (0) target = $region49
  $region48: #{dnce_forward.2} parent=0 // pred_region
    _
  $region49: #{dnce_forward.2} parent=0 // pred_fallthru
    _
  // Predicated region
  $region50: #{dnce_forward.2} parent=0 // pred_check
    _
  $region51: #{dnce_forward.2} parent=0 // pred_check_branch
    %46 = sbr.rel (0) target = $region53
  $region52: #{dnce_forward.2} parent=0 // pred_region
    _
  $region53: #{dnce_forward.2} parent=0 // pred_fallthru
    _
  // Predicated region
  $region54: #{dnce_forward.2} parent=0 // pred_check
    _
  $region55: #{dnce_forward.2} parent=0 // pred_check_branch
    %48 = sbr.rel (0) target = $region57
  $region56: #{dnce_forward.2} parent=0 // pred_region
    _
  $region57: #{dnce_forward.2} parent=0 // pred_fallthru
    _
  %v49 = vld [vmem:[%s0] sm:$0xff]
  %v50 = vld [vmem:[%s0 + $0x8] sm:$0xff]
  %v51 = vld [vmem:[%s2] sm:$0xff]
  %v52 = vld [vmem:[%s2 + $0x8] sm:$0xff]
  %v53 = vld [vmem:[%s2 + $0x10] sm:$0xff]
  %v54 = vld [vmem:[%s2 + $0x18] sm:$0xff]
  %v55 = vld [vmem:[%s2 + $0x20] sm:$0xff]
  %v56 = vld [vmem:[%s2 + $0x28] sm:$0xff]
  %v57 = vld [vmem:[%s2 + $0x30] sm:$0xff]
  %v58 = vld [vmem:[%s2 + $0x38] sm:$0xff]
  %v59 = vld [vmem:[%s2 + $0x40] sm:$0xff]
  %v60 = vld [vmem:[%s2 + $0x48] sm:$0xff]
  %v61 = vld [vmem:[%s2 + $0x50] sm:$0xff]
  %v62 = vld [vmem:[%s2 + $0x58] sm:$0xff]
  %v63 = vld [vmem:[%s2 + $0x60] sm:$0xff]
  %v64 = vld [vmem:[%s2 + $0x68] sm:$0xff]
  %v65 = vld [vmem:[%s2 + $0x70] sm:$0xff]
  %v66 = vld [vmem:[%s2 + $0x78] sm:$0xff]
  %v67 = vld [vmem:[%s3] sm:$0x1]
  %v69 = vlaneseq
  %v70 = vshrl.u32 %v69, 7
  %v71 = vsub.s32 0, %v70
  %v72 = vrot.slane %v67, %v71
  %74 = vmatprep.subr.mxu0 0.0
  %75 = vmatpush1.msra.mxu0 %v51
  %76 = vmatprep.subr.mxu0 0.0
  %77 = vmatpush1.msra.mxu0 %v52
  %78 = vmatprep.subr.mxu0 0.0
  %79 = vmatpush1.msra.mxu0 %v53
  %80 = vmatprep.subr.mxu0 0.0
  %81 = vmatpush1.msra.mxu0 %v54
  %82 = vmatprep.subr.mxu0 0.0
  %83 = vmatpush1.msra.mxu0 %v55
  %84 = vmatprep.subr.mxu0 0.0
  %85 = vmatpush1.msra.mxu0 %v56
  %86 = vmatprep.subr.mxu0 0.0
  %87 = vmatpush1.msra.mxu0 %v57
  %88 = vmatprep.subr.mxu0 0.0
  %89 = vmatpush1.msra.mxu0 %v58
  %90 = vmatprep.subr.mxu0 0.0
  %91 = vmatpush1.msra.mxu0 %v59
  %92 = vmatprep.subr.mxu0 0.0
  %93 = vmatpush1.msra.mxu0 %v60
  %94 = vmatprep.subr.mxu0 0.0
  %95 = vmatpush1.msra.mxu0 %v61
  %96 = vmatprep.subr.mxu0 0.0
  %97 = vmatpush1.msra.mxu0 %v62
  %98 = vmatprep.subr.mxu0 0.0
  %99 = vmatpush1.msra.mxu0 %v63
  %100 = vmatprep.subr.mxu0 0.0
  %101 = vmatpush1.msra.mxu0 %v64
  %102 = vmatprep.subr.mxu0 0.0
  %103 = vmatpush1.msra.mxu0 %v65
  %104 = vmatprep.subr.mxu0 0.0
  %105 = vmatpush1.msra.mxu0 %v66
  %106 = vmatprep.subr.mxu0 0.0
  %107 = vmatpush1.msra.mxu0 0.0
  %108 = vmatprep.subr.mxu0 0.0
  %109 = vmatpush1.msra.mxu0 0.0
  %110 = vmatprep.subr.mxu0 0.0
  %111 = vmatpush1.msra.mxu0 0.0
  %112 = vmatprep.subr.mxu0 0.0
  %113 = vmatpush1.msra.mxu0 0.0
  %114 = vmatprep.subr.mxu0 0.0
  %115 = vmatpush1.msra.mxu0 0.0
  %116 = vmatprep.subr.mxu0 0.0
  %117 = vmatpush1.msra.mxu0 0.0
  %118 = vmatprep.subr.mxu0 0.0
  %119 = vmatpush1.msra.mxu0 0.0
  %120 = vmatprep.subr.mxu0 0.0
  %121 = vmatpush1.msra.mxu0 0.0
  %122 = vmatprep.subr.mxu0 0.0
  %123 = vmatpush1.msra.mxu0 0.0
  %124 = vmatprep.subr.mxu0 0.0
  %125 = vmatpush1.msra.mxu0 0.0
  %126 = vmatprep.subr.mxu0 0.0
  %127 = vmatpush1.msra.mxu0 0.0
  %128 = vmatprep.subr.mxu0 0.0
  %129 = vmatpush1.msra.mxu0 0.0
  %130 = vmatprep.subr.mxu0 0.0
  %131 = vmatpush1.msra.mxu0 0.0
  %132 = vmatprep.subr.mxu0 0.0
  %133 = vmatpush1.msra.mxu0 0.0
  %134 = vmatprep.subr.mxu0 0.0
  %135 = vmatpush1.msra.mxu0 0.0
  %136 = vmatprep.subr.mxu0 0.0
  %137 = vmatpush1.msra.mxu0 0.0
  %138 = vmatprep.mubr.f32.mxu0 0.0
  %139 = vmatmul.mubr.f32.gmra.mrb[0].mxu0 %v49
  %v140 = vpop.f32.mrb[0].mxu0
  %v141 = vadd.f32 %v72, %v140
  %v142 = vpop.f32.mrb[0].mxu0
  %143 = vmatprep.mubr.f32.mxu0 0.0
  %144 = vmatmul.mubr.f32.gmra.mrb[0].mxu0 %v50
  %v145 = vpop.f32.mrb[0].mxu0
  %v146 = vadd.f32 %v72, %v145
  %v147 = vpop.f32.mrb[0].mxu0
  %148 = vdwg.mxu0
  %v149 = vmax.f32 %v141, 0.0
  %v150 = vmax.f32 %v146, 0.0
  %v151 = vld [vmem:[%s4] sm:$0xff]
  %v152 = vld [vmem:[%s4 + $0x8] sm:$0xff]
  %v153 = vld [vmem:[%s4 + $0x10] sm:$0xff]
  %v154 = vld [vmem:[%s4 + $0x18] sm:$0xff]
  %v155 = vld [vmem:[%s4 + $0x20] sm:$0xff]
  %v156 = vld [vmem:[%s4 + $0x28] sm:$0xff]
  %v157 = vld [vmem:[%s4 + $0x30] sm:$0xff]
  %v158 = vld [vmem:[%s4 + $0x38] sm:$0xff]
  %v159 = vld [vmem:[%s4 + $0x40] sm:$0xff]
  %v160 = vld [vmem:[%s4 + $0x48] sm:$0xff]
  %v161 = vld [vmem:[%s4 + $0x50] sm:$0xff]
  %v162 = vld [vmem:[%s4 + $0x58] sm:$0xff]
  %v163 = vld [vmem:[%s4 + $0x60] sm:$0xff]
  %v164 = vld [vmem:[%s4 + $0x68] sm:$0xff]
  %v165 = vld [vmem:[%s4 + $0x70] sm:$0xff]
  %v166 = vld [vmem:[%s4 + $0x78] sm:$0xff]
  %v167 = vld [vmem:[%s5] sm:$0x1]
  %v169 = vlaneseq
  %v170 = vshrl.u32 %v169, 7
  %v171 = vsub.s32 0, %v170
  %v172 = vrot.slane %v167, %v171
  %174 = vmatprep.subr.mxu0 0.0
  %175 = vmatpush1.msra.mxu0 %v151
  %176 = vmatprep.subr.mxu0 0.0
  %177 = vmatpush1.msra.mxu0 %v152
  %178 = vmatprep.subr.mxu0 0.0
  %179 = vmatpush1.msra.mxu0 %v153
  %180 = vmatprep.subr.mxu0 0.0
  %181 = vmatpush1.msra.mxu0 %v154
  %182 = vmatprep.subr.mxu0 0.0
  %183 = vmatpush1.msra.mxu0 %v155
  %184 = vmatprep.subr.mxu0 0.0
  %185 = vmatpush1.msra.mxu0 %v156
  %186 = vmatprep.subr.mxu0 0.0
  %187 = vmatpush1.msra.mxu0 %v157
  %188 = vmatprep.subr.mxu0 0.0
  %189 = vmatpush1.msra.mxu0 %v158
  %190 = vmatprep.subr.mxu0 0.0
  %191 = vmatpush1.msra.mxu0 %v159
  %192 = vmatprep.subr.mxu0 0.0
  %193 = vmatpush1.msra.mxu0 %v160
  %194 = vmatprep.subr.mxu0 0.0
  %195 = vmatpush1.msra.mxu0 %v161
  %196 = vmatprep.subr.mxu0 0.0
  %197 = vmatpush1.msra.mxu0 %v162
  %198 = vmatprep.subr.mxu0 0.0
  %199 = vmatpush1.msra.mxu0 %v163
  %200 = vmatprep.subr.mxu0 0.0
  %201 = vmatpush1.msra.mxu0 %v164
  %202 = vmatprep.subr.mxu0 0.0
  %203 = vmatpush1.msra.mxu0 %v165
  %204 = vmatprep.subr.mxu0 0.0
  %205 = vmatpush1.msra.mxu0 %v166
  %206 = vmatprep.subr.mxu0 0.0
  %207 = vmatpush1.msra.mxu0 0.0
  %208 = vmatprep.subr.mxu0 0.0
  %209 = vmatpush1.msra.mxu0 0.0
  %210 = vmatprep.subr.mxu0 0.0
  %211 = vmatpush1.msra.mxu0 0.0
  %212 = vmatprep.subr.mxu0 0.0
  %213 = vmatpush1.msra.mxu0 0.0
  %214 = vmatprep.subr.mxu0 0.0
  %215 = vmatpush1.msra.mxu0 0.0
  %216 = vmatprep.subr.mxu0 0.0
  %217 = vmatpush1.msra.mxu0 0.0
  %218 = vmatprep.subr.mxu0 0.0
  %219 = vmatpush1.msra.mxu0 0.0
  %220 = vmatprep.subr.mxu0 0.0
  %221 = vmatpush1.msra.mxu0 0.0
  %222 = vmatprep.subr.mxu0 0.0
  %223 = vmatpush1.msra.mxu0 0.0
  %224 = vmatprep.subr.mxu0 0.0
  %225 = vmatpush1.msra.mxu0 0.0
  %226 = vmatprep.subr.mxu0 0.0
  %227 = vmatpush1.msra.mxu0 0.0
  %228 = vmatprep.subr.mxu0 0.0
  %229 = vmatpush1.msra.mxu0 0.0
  %230 = vmatprep.subr.mxu0 0.0
  %231 = vmatpush1.msra.mxu0 0.0
  %232 = vmatprep.subr.mxu0 0.0
  %233 = vmatpush1.msra.mxu0 0.0
  %234 = vmatprep.subr.mxu0 0.0
  %235 = vmatpush1.msra.mxu0 0.0
  %236 = vmatprep.subr.mxu0 0.0
  %237 = vmatpush1.msra.mxu0 0.0
  %238 = vmatprep.mubr.f32.mxu0 0.0
  %239 = vmatmul.mubr.f32.gmra.mrb[0].mxu0 %v149
  %v240 = vpop.f32.mrb[0].mxu0
  %v241 = vadd.f32 %v172, %v240
  %v242 = vpop.f32.mrb[0].mxu0
  %243 = vmatprep.mubr.f32.mxu0 0.0
  %244 = vmatmul.mubr.f32.gmra.mrb[0].mxu0 %v150
  %v245 = vpop.f32.mrb[0].mxu0
  %v246 = vadd.f32 %v172, %v245
  %v247 = vpop.f32.mrb[0].mxu0
  %248 = vdwg.mxu0
  %v249 = vmax.f32 %v241, 0.0
  %v250 = vmax.f32 %v246, 0.0
  %v251 = vld [vmem:[%s6] sm:$0xff]
  %v252 = vld [vmem:[%s6 + $0x8] sm:$0xff]
  %v253 = vld [vmem:[%s6 + $0x10] sm:$0xff]
  %v254 = vld [vmem:[%s6 + $0x18] sm:$0xff]
  %v255 = vld [vmem:[%s6 + $0x20] sm:$0xff]
  %v256 = vld [vmem:[%s6 + $0x28] sm:$0xff]
  %v257 = vld [vmem:[%s6 + $0x30] sm:$0xff]
  %v258 = vld [vmem:[%s6 + $0x38] sm:$0xff]
  %v259 = vld [vmem:[%s6 + $0x40] sm:$0xff]
  %v260 = vld [vmem:[%s6 + $0x48] sm:$0xff]
  %v261 = vld [vmem:[%s6 + $0x50] sm:$0xff]
  %v262 = vld [vmem:[%s6 + $0x58] sm:$0xff]
  %v263 = vld [vmem:[%s6 + $0x60] sm:$0xff]
  %v264 = vld [vmem:[%s6 + $0x68] sm:$0xff]
  %v265 = vld [vmem:[%s6 + $0x70] sm:$0xff]
  %v266 = vld [vmem:[%s6 + $0x78] sm:$0xff]
  %v267 = vld [vmem:[%s7] sm:$0x1]
  %v269 = vlaneseq
  %v270 = vshrl.u32 %v269, 7
  %v271 = vsub.s32 0, %v270
  %v272 = vrot.slane %v267, %v271
  %274 = vmatprep.subr.mxu0 0.0
  %275 = vmatpush1.msra.mxu0 %v251
  %276 = vmatprep.subr.mxu0 0.0
  %277 = vmatpush1.msra.mxu0 %v252
  %278 = vmatprep.subr.mxu0 0.0
  %279 = vmatpush1.msra.mxu0 %v253
  %280 = vmatprep.subr.mxu0 0.0
  %281 = vmatpush1.msra.mxu0 %v254
  %282 = vmatprep.subr.mxu0 0.0
  %283 = vmatpush1.msra.mxu0 %v255
  %284 = vmatprep.subr.mxu0 0.0
  %285 = vmatpush1.msra.mxu0 %v256
  %286 = vmatprep.subr.mxu0 0.0
  %287 = vmatpush1.msra.mxu0 %v257
  %288 = vmatprep.subr.mxu0 0.0
  %289 = vmatpush1.msra.mxu0 %v258
  %290 = vmatprep.subr.mxu0 0.0
  %291 = vmatpush1.msra.mxu0 %v259
  %292 = vmatprep.subr.mxu0 0.0
  %293 = vmatpush1.msra.mxu0 %v260
  %294 = vmatprep.subr.mxu0 0.0
  %295 = vmatpush1.msra.mxu0 %v261
  %296 = vmatprep.subr.mxu0 0.0
  %297 = vmatpush1.msra.mxu0 %v262
  %298 = vmatprep.subr.mxu0 0.0
  %299 = vmatpush1.msra.mxu0 %v263
  %300 = vmatprep.subr.mxu0 0.0
  %301 = vmatpush1.msra.mxu0 %v264
  %302 = vmatprep.subr.mxu0 0.0
  %303 = vmatpush1.msra.mxu0 %v265
  %304 = vmatprep.subr.mxu0 0.0
  %305 = vmatpush1.msra.mxu0 %v266
  %306 = vmatprep.subr.mxu0 0.0
  %307 = vmatpush1.msra.mxu0 0.0
  %308 = vmatprep.subr.mxu0 0.0
  %309 = vmatpush1.msra.mxu0 0.0
  %310 = vmatprep.subr.mxu0 0.0
  %311 = vmatpush1.msra.mxu0 0.0
  %312 = vmatprep.subr.mxu0 0.0
  %313 = vmatpush1.msra.mxu0 0.0
  %314 = vmatprep.subr.mxu0 0.0
  %315 = vmatpush1.msra.mxu0 0.0
  %316 = vmatprep.subr.mxu0 0.0
  %317 = vmatpush1.msra.mxu0 0.0
  %318 = vmatprep.subr.mxu0 0.0
  %319 = vmatpush1.msra.mxu0 0.0
  %320 = vmatprep.subr.mxu0 0.0
  %321 = vmatpush1.msra.mxu0 0.0
  %322 = vmatprep.subr.mxu0 0.0
  %323 = vmatpush1.msra.mxu0 0.0
  %324 = vmatprep.subr.mxu0 0.0
  %325 = vmatpush1.msra.mxu0 0.0
  %326 = vmatprep.subr.mxu0 0.0
  %327 = vmatpush1.msra.mxu0 0.0
  %328 = vmatprep.subr.mxu0 0.0
  %329 = vmatpush1.msra.mxu0 0.0
  %330 = vmatprep.subr.mxu0 0.0
  %331 = vmatpush1.msra.mxu0 0.0
  %332 = vmatprep.subr.mxu0 0.0
  %333 = vmatpush1.msra.mxu0 0.0
  %334 = vmatprep.subr.mxu0 0.0
  %335 = vmatpush1.msra.mxu0 0.0
  %336 = vmatprep.subr.mxu0 0.0
  %337 = vmatpush1.msra.mxu0 0.0
  %338 = vmatprep.mubr.f32.mxu0 0.0
  %339 = vmatmul.mubr.f32.gmra.mrb[0].mxu0 %v249
  %v340 = vpop.f32.mrb[0].mxu0
  %v341 = vadd.f32 %v272, %v340
  %v342 = vpop.f32.mrb[0].mxu0
  %343 = vmatprep.mubr.f32.mxu0 0.0
  %344 = vmatmul.mubr.f32.gmra.mrb[0].mxu0 %v250
  %v345 = vpop.f32.mrb[0].mxu0
  %v346 = vadd.f32 %v272, %v345
  %v347 = vpop.f32.mrb[0].mxu0
  %348 = vdwg.mxu0
  %v349 = vld [vmem:[%s1] sm:$0xff]
  %v350 = vld [vmem:[%s1 + $0x8] sm:$0xff]
  %v351 = vld [vmem:[%s8] sm:$0xff]
  %v352 = vld [vmem:[%s8 + $0x8] sm:$0xff]
  %v353 = vld [vmem:[%s8 + $0x10] sm:$0xff]
  %v354 = vld [vmem:[%s8 + $0x18] sm:$0xff]
  %v355 = vld [vmem:[%s8 + $0x20] sm:$0xff]
  %v356 = vld [vmem:[%s8 + $0x28] sm:$0xff]
  %v357 = vld [vmem:[%s8 + $0x30] sm:$0xff]
  %v358 = vld [vmem:[%s8 + $0x38] sm:$0xff]
  %v359 = vld [vmem:[%s8 + $0x40] sm:$0xff]
  %v360 = vld [vmem:[%s8 + $0x48] sm:$0xff]
  %v361 = vld [vmem:[%s8 + $0x50] sm:$0xff]
  %v362 = vld [vmem:[%s8 + $0x58] sm:$0xff]
  %v363 = vld [vmem:[%s8 + $0x60] sm:$0xff]
  %v364 = vld [vmem:[%s8 + $0x68] sm:$0xff]
  %v365 = vld [vmem:[%s8 + $0x70] sm:$0xff]
  %v366 = vld [vmem:[%s8 + $0x78] sm:$0xff]
  %v367 = vld [vmem:[%s9] sm:$0x1]
  %v369 = vlaneseq
  %v370 = vshrl.u32 %v369, 7
  %v371 = vsub.s32 0, %v370
  %v372 = vrot.slane %v367, %v371
  %374 = vmatprep.subr.mxu0 0.0
  %375 = vmatpush1.msra.mxu0 %v351
  %376 = vmatprep.subr.mxu0 0.0
  %377 = vmatpush1.msra.mxu0 %v352
  %378 = vmatprep.subr.mxu0 0.0
  %379 = vmatpush1.msra.mxu0 %v353
  %380 = vmatprep.subr.mxu0 0.0
  %381 = vmatpush1.msra.mxu0 %v354
  %382 = vmatprep.subr.mxu0 0.0
  %383 = vmatpush1.msra.mxu0 %v355
  %384 = vmatprep.subr.mxu0 0.0
  %385 = vmatpush1.msra.mxu0 %v356
  %386 = vmatprep.subr.mxu0 0.0
  %387 = vmatpush1.msra.mxu0 %v357
  %388 = vmatprep.subr.mxu0 0.0
  %389 = vmatpush1.msra.mxu0 %v358
  %390 = vmatprep.subr.mxu0 0.0
  %391 = vmatpush1.msra.mxu0 %v359
  %392 = vmatprep.subr.mxu0 0.0
  %393 = vmatpush1.msra.mxu0 %v360
  %394 = vmatprep.subr.mxu0 0.0
  %395 = vmatpush1.msra.mxu0 %v361
  %396 = vmatprep.subr.mxu0 0.0
  %397 = vmatpush1.msra.mxu0 %v362
  %398 = vmatprep.subr.mxu0 0.0
  %399 = vmatpush1.msra.mxu0 %v363
  %400 = vmatprep.subr.mxu0 0.0
  %401 = vmatpush1.msra.mxu0 %v364
  %402 = vmatprep.subr.mxu0 0.0
  %403 = vmatpush1.msra.mxu0 %v365
  %404 = vmatprep.subr.mxu0 0.0
  %405 = vmatpush1.msra.mxu0 %v366
  %406 = vmatprep.subr.mxu0 0.0
  %407 = vmatpush1.msra.mxu0 0.0
  %408 = vmatprep.subr.mxu0 0.0
  %409 = vmatpush1.msra.mxu0 0.0
  %410 = vmatprep.subr.mxu0 0.0
  %411 = vmatpush1.msra.mxu0 0.0
  %412 = vmatprep.subr.mxu0 0.0
  %413 = vmatpush1.msra.mxu0 0.0
  %414 = vmatprep.subr.mxu0 0.0
  %415 = vmatpush1.msra.mxu0 0.0
  %416 = vmatprep.subr.mxu0 0.0
  %417 = vmatpush1.msra.mxu0 0.0
  %418 = vmatprep.subr.mxu0 0.0
  %419 = vmatpush1.msra.mxu0 0.0
  %420 = vmatprep.subr.mxu0 0.0
  %421 = vmatpush1.msra.mxu0 0.0
  %422 = vmatprep.subr.mxu0 0.0
  %423 = vmatpush1.msra.mxu0 0.0
  %424 = vmatprep.subr.mxu0 0.0
  %425 = vmatpush1.msra.mxu0 0.0
  %426 = vmatprep.subr.mxu0 0.0
  %427 = vmatpush1.msra.mxu0 0.0
  %428 = vmatprep.subr.mxu0 0.0
  %429 = vmatpush1.msra.mxu0 0.0
  %430 = vmatprep.subr.mxu0 0.0
  %431 = vmatpush1.msra.mxu0 0.0
  %432 = vmatprep.subr.mxu0 0.0
  %433 = vmatpush1.msra.mxu0 0.0
  %434 = vmatprep.subr.mxu0 0.0
  %435 = vmatpush1.msra.mxu0 0.0
  %436 = vmatprep.subr.mxu0 0.0
  %437 = vmatpush1.msra.mxu0 0.0
  %438 = vmatprep.mubr.f32.mxu0 0.0
  %439 = vmatmul.mubr.f32.gmra.mrb[0].mxu0 %v349
  %v440 = vpop.f32.mrb[0].mxu0
  %v441 = vadd.f32 %v372, %v440
  %v442 = vpop.f32.mrb[0].mxu0
  %443 = vmatprep.mubr.f32.mxu0 0.0
  %444 = vmatmul.mubr.f32.gmra.mrb[0].mxu0 %v350
  %v445 = vpop.f32.mrb[0].mxu0
  %v446 = vadd.f32 %v372, %v445
  %v447 = vpop.f32.mrb[0].mxu0
  %448 = vdwg.mxu0
  %v449 = vmax.f32 %v441, 0.0
  %v450 = vmax.f32 %v446, 0.0
  %v451 = vld [vmem:[%s10] sm:$0xff]
  %v452 = vld [vmem:[%s10 + $0x8] sm:$0xff]
  %v453 = vld [vmem:[%s10 + $0x10] sm:$0xff]
  %v454 = vld [vmem:[%s10 + $0x18] sm:$0xff]
  %v455 = vld [vmem:[%s10 + $0x20] sm:$0xff]
  %v456 = vld [vmem:[%s10 + $0x28] sm:$0xff]
  %v457 = vld [vmem:[%s10 + $0x30] sm:$0xff]
  %v458 = vld [vmem:[%s10 + $0x38] sm:$0xff]
  %v459 = vld [vmem:[%s10 + $0x40] sm:$0xff]
  %v460 = vld [vmem:[%s10 + $0x48] sm:$0xff]
  %v461 = vld [vmem:[%s10 + $0x50] sm:$0xff]
  %v462 = vld [vmem:[%s10 + $0x58] sm:$0xff]
  %v463 = vld [vmem:[%s10 + $0x60] sm:$0xff]
  %v464 = vld [vmem:[%s10 + $0x68] sm:$0xff]
  %v465 = vld [vmem:[%s10 + $0x70] sm:$0xff]
  %v466 = vld [vmem:[%s10 + $0x78] sm:$0xff]
  %v467 = vld [vmem:[%s11] sm:$0x1]
  %v469 = vlaneseq
  %v470 = vshrl.u32 %v469, 7
  %v471 = vsub.s32 0, %v470
  %v472 = vrot.slane %v467, %v471
  %474 = vmatprep.subr.mxu0 0.0
  %475 = vmatpush1.msra.mxu0 %v451
  %476 = vmatprep.subr.mxu0 0.0
  %477 = vmatpush1.msra.mxu0 %v452
  %478 = vmatprep.subr.mxu0 0.0
  %479 = vmatpush1.msra.mxu0 %v453
  %480 = vmatprep.subr.mxu0 0.0
  %481 = vmatpush1.msra.mxu0 %v454
  %482 = vmatprep.subr.mxu0 0.0
  %483 = vmatpush1.msra.mxu0 %v455
  %484 = vmatprep.subr.mxu0 0.0
  %485 = vmatpush1.msra.mxu0 %v456
  %486 = vmatprep.subr.mxu0 0.0
  %487 = vmatpush1.msra.mxu0 %v457
  %488 = vmatprep.subr.mxu0 0.0
  %489 = vmatpush1.msra.mxu0 %v458
  %490 = vmatprep.subr.mxu0 0.0
  %491 = vmatpush1.msra.mxu0 %v459
  %492 = vmatprep.subr.mxu0 0.0
  %493 = vmatpush1.msra.mxu0 %v460
  %494 = vmatprep.subr.mxu0 0.0
  %495 = vmatpush1.msra.mxu0 %v461
  %496 = vmatprep.subr.mxu0 0.0
  %497 = vmatpush1.msra.mxu0 %v462
  %498 = vmatprep.subr.mxu0 0.0
  %499 = vmatpush1.msra.mxu0 %v463
  %500 = vmatprep.subr.mxu0 0.0
  %501 = vmatpush1.msra.mxu0 %v464
  %502 = vmatprep.subr.mxu0 0.0
  %503 = vmatpush1.msra.mxu0 %v465
  %504 = vmatprep.subr.mxu0 0.0
  %505 = vmatpush1.msra.mxu0 %v466
  %506 = vmatprep.subr.mxu0 0.0
  %507 = vmatpush1.msra.mxu0 0.0
  %508 = vmatprep.subr.mxu0 0.0
  %509 = vmatpush1.msra.mxu0 0.0
  %510 = vmatprep.subr.mxu0 0.0
  %511 = vmatpush1.msra.mxu0 0.0
  %512 = vmatprep.subr.mxu0 0.0
  %513 = vmatpush1.msra.mxu0 0.0
  %514 = vmatprep.subr.mxu0 0.0
  %515 = vmatpush1.msra.mxu0 0.0
  %516 = vmatprep.subr.mxu0 0.0
  %517 = vmatpush1.msra.mxu0 0.0
  %518 = vmatprep.subr.mxu0 0.0
  %519 = vmatpush1.msra.mxu0 0.0
  %520 = vmatprep.subr.mxu0 0.0
  %521 = vmatpush1.msra.mxu0 0.0
  %522 = vmatprep.subr.mxu0 0.0
  %523 = vmatpush1.msra.mxu0 0.0
  %524 = vmatprep.subr.mxu0 0.0
  %525 = vmatpush1.msra.mxu0 0.0
  %526 = vmatprep.subr.mxu0 0.0
  %527 = vmatpush1.msra.mxu0 0.0
  %528 = vmatprep.subr.mxu0 0.0
  %529 = vmatpush1.msra.mxu0 0.0
  %530 = vmatprep.subr.mxu0 0.0
  %531 = vmatpush1.msra.mxu0 0.0
  %532 = vmatprep.subr.mxu0 0.0
  %533 = vmatpush1.msra.mxu0 0.0
  %534 = vmatprep.subr.mxu0 0.0
  %535 = vmatpush1.msra.mxu0 0.0
  %536 = vmatprep.subr.mxu0 0.0
  %537 = vmatpush1.msra.mxu0 0.0
  %538 = vmatprep.mubr.f32.mxu0 0.0
  %539 = vmatmul.mubr.f32.gmra.mrb[0].mxu0 %v449
  %v540 = vpop.f32.mrb[0].mxu0
  %v541 = vadd.f32 %v472, %v540
  %v542 = vpop.f32.mrb[0].mxu0
  %543 = vmatprep.mubr.f32.mxu0 0.0
  %544 = vmatmul.mubr.f32.gmra.mrb[0].mxu0 %v450
  %v545 = vpop.f32.mrb[0].mxu0
  %v546 = vadd.f32 %v472, %v545
  %v547 = vpop.f32.mrb[0].mxu0
  %548 = vdwg.mxu0
  %v549 = vmax.f32 %v541, 0.0
  %v550 = vmax.f32 %v546, 0.0
  %v551 = vld [vmem:[%s12] sm:$0xff]
  %v552 = vld [vmem:[%s12 + $0x8] sm:$0xff]
  %v553 = vld [vmem:[%s12 + $0x10] sm:$0xff]
  %v554 = vld [vmem:[%s12 + $0x18] sm:$0xff]
  %v555 = vld [vmem:[%s12 + $0x20] sm:$0xff]
  %v556 = vld [vmem:[%s12 + $0x28] sm:$0xff]
  %v557 = vld [vmem:[%s12 + $0x30] sm:$0xff]
  %v558 = vld [vmem:[%s12 + $0x38] sm:$0xff]
  %v559 = vld [vmem:[%s12 + $0x40] sm:$0xff]
  %v560 = vld [vmem:[%s12 + $0x48] sm:$0xff]
  %v561 = vld [vmem:[%s12 + $0x50] sm:$0xff]
  %v562 = vld [vmem:[%s12 + $0x58] sm:$0xff]
  %v563 = vld [vmem:[%s12 + $0x60] sm:$0xff]
  %v564 = vld [vmem:[%s12 + $0x68] sm:$0xff]
  %v565 = vld [vmem:[%s12 + $0x70] sm:$0xff]
  %v566 = vld [vmem:[%s12 + $0x78] sm:$0xff]
  %v567 = vld [vmem:[%s13] sm:$0x1]
  %v569 = vlaneseq
  %v570 = vshrl.u32 %v569, 7
  %v571 = vsub.s32 0, %v570
  %v572 = vrot.slane %v567, %v571
  %574 = vmatprep.subr.mxu0 0.0
  %575 = vmatpush1.msra.mxu0 %v551
  %576 = vmatprep.subr.mxu0 0.0
  %577 = vmatpush1.msra.mxu0 %v552
  %578 = vmatprep.subr.mxu0 0.0
  %579 = vmatpush1.msra.mxu0 %v553
  %580 = vmatprep.subr.mxu0 0.0
  %581 = vmatpush1.msra.mxu0 %v554
  %582 = vmatprep.subr.mxu0 0.0
  %583 = vmatpush1.msra.mxu0 %v555
  %584 = vmatprep.subr.mxu0 0.0
  %585 = vmatpush1.msra.mxu0 %v556
  %586 = vmatprep.subr.mxu0 0.0
  %587 = vmatpush1.msra.mxu0 %v557
  %588 = vmatprep.subr.mxu0 0.0
  %589 = vmatpush1.msra.mxu0 %v558
  %590 = vmatprep.subr.mxu0 0.0
  %591 = vmatpush1.msra.mxu0 %v559
  %592 = vmatprep.subr.mxu0 0.0
  %593 = vmatpush1.msra.mxu0 %v560
  %594 = vmatprep.subr.mxu0 0.0
  %595 = vmatpush1.msra.mxu0 %v561
  %596 = vmatprep.subr.mxu0 0.0
  %597 = vmatpush1.msra.mxu0 %v562
  %598 = vmatprep.subr.mxu0 0.0
  %599 = vmatpush1.msra.mxu0 %v563
  %600 = vmatprep.subr.mxu0 0.0
  %601 = vmatpush1.msra.mxu0 %v564
  %602 = vmatprep.subr.mxu0 0.0
  %603 = vmatpush1.msra.mxu0 %v565
  %604 = vmatprep.subr.mxu0 0.0
  %605 = vmatpush1.msra.mxu0 %v566
  %606 = vmatprep.subr.mxu0 0.0
  %607 = vmatpush1.msra.mxu0 0.0
  %608 = vmatprep.subr.mxu0 0.0
  %609 = vmatpush1.msra.mxu0 0.0
  %610 = vmatprep.subr.mxu0 0.0
  %611 = vmatpush1.msra.mxu0 0.0
  %612 = vmatprep.subr.mxu0 0.0
  %613 = vmatpush1.msra.mxu0 0.0
  %614 = vmatprep.subr.mxu0 0.0
  %615 = vmatpush1.msra.mxu0 0.0
  %616 = vmatprep.subr.mxu0 0.0
  %617 = vmatpush1.msra.mxu0 0.0
  %618 = vmatprep.subr.mxu0 0.0
  %619 = vmatpush1.msra.mxu0 0.0
  %620 = vmatprep.subr.mxu0 0.0
  %621 = vmatpush1.msra.mxu0 0.0
  %622 = vmatprep.subr.mxu0 0.0
  %623 = vmatpush1.msra.mxu0 0.0
  %624 = vmatprep.subr.mxu0 0.0
  %625 = vmatpush1.msra.mxu0 0.0
  %626 = vmatprep.subr.mxu0 0.0
  %627 = vmatpush1.msra.mxu0 0.0
  %628 = vmatprep.subr.mxu0 0.0
  %629 = vmatpush1.msra.mxu0 0.0
  %630 = vmatprep.subr.mxu0 0.0
  %631 = vmatpush1.msra.mxu0 0.0
  %632 = vmatprep.subr.mxu0 0.0
  %633 = vmatpush1.msra.mxu0 0.0
  %634 = vmatprep.subr.mxu0 0.0
  %635 = vmatpush1.msra.mxu0 0.0
  %636 = vmatprep.subr.mxu0 0.0
  %637 = vmatpush1.msra.mxu0 0.0
  %638 = vmatprep.mubr.f32.mxu0 0.0
  %639 = vmatmul.mubr.f32.gmra.mrb[0].mxu0 %v549
  %v640 = vpop.f32.mrb[0].mxu0
  %v641 = vadd.f32 %v572, %v640
  %v642 = vpop.f32.mrb[0].mxu0
  %643 = vmatprep.mubr.f32.mxu0 0.0
  %644 = vmatmul.mubr.f32.gmra.mrb[0].mxu0 %v550
  %v645 = vpop.f32.mrb[0].mxu0
  %v646 = vadd.f32 %v572, %v645
  %v647 = vpop.f32.mrb[0].mxu0
  %648 = vdwg.mxu0
  %649 = vst [vmem:[%s14] sm:$0xff] %v341
  %650 = vst [vmem:[%s14 + $0x8] sm:$0xff] %v346
  %651 = vst [vmem:[%s15] sm:$0xff] %v641
  %652 = vst [vmem:[%s15 + $0x8] sm:$0xff] %v646
  // Predicated region
  $region58: #{dnce_forward.2} parent=0 // pred_check
    _
  $region59: #{dnce_forward.2} parent=0 // pred_check_branch
    %654 = sbr.rel (0) target = $region61
  $region60: #{dnce_forward.2} parent=0 // pred_region
    _
  $region61: #{dnce_forward.2} parent=0 // pred_fallthru
    _
  // Predicated region
  $region62: #{dnce_forward.2} parent=0 // pred_check
    _
  $region63: #{dnce_forward.2} parent=0 // pred_check_branch
    %656 = sbr.rel (0) target = $region65
  $region64: #{dnce_forward.2} parent=0 // pred_region
    _
  $region65: #{dnce_forward.2} parent=0 // pred_fallthru
    _
  // Predicated region
  $region66: #{dnce_forward.2} parent=0 // pred_check
    _
  $region67: #{dnce_forward.2} parent=0 // pred_check_branch
    %658 = sbr.rel (0) target = $region69
  $region68: #{dnce_forward.2} parent=0 // pred_region
    _
  $region69: #{dnce_forward.2} parent=0 // pred_fallthru
    _
  // Predicated region
  $region70: #{dnce_forward.2} parent=0 // pred_check
    _
  $region71: #{dnce_forward.2} parent=0 // pred_check_branch
    %660 = sbr.rel (0) target = $region73
  $region72: #{dnce_forward.2} parent=0 // pred_region
    _
  $region73: #{dnce_forward.2} parent=0 // pred_fallthru
    _

</llo_original>
